<compile_context>
chip_gen: v6e
topology: v6e:2x2x1
jax: 0.10.0
libtpu: 0.0.40
codegen_flags: <defaults>
</compile_context>

<pallas_src>
import jax
import jax.numpy as jnp
import numpy as np
from jax import lax
from jax.experimental import pallas as pl
from jax.experimental.pallas import tpu as pltpu

GAMMA = 2        # PPM default; hard-coded as s * s in the kernel
EPS = 1e-8       # cosine_similarity eps
# NOTE: torch clamps the *product* of the two norms at eps; here each vector's
# norm is clamped individually — they differ only when a vector is ~zero.


def _make_ppm_kernel(b_blk, n_kc, tk):
    """Builds the kernel body; all tiling parameters are static (closed over)."""

    def kernel(xk_ref, xq_ref, nrm_ref, w_ref, b_ref, o_ref):
        # xk_ref : (b_blk, C, N_pad) bf16   L2-normalized keys (full key range)
        # xq_ref : (b_blk, C, tq)    bf16   L2-normalized queries (this tile)
        # nrm_ref: (b_blk, 1, N_pad) f32    clamped key norms (x = xn * norm)
        # w_ref  : (C, C)            f32    1x1-conv weight
        # b_ref  : (C, 1)            f32    1x1-conv bias
        # o_ref  : (b_blk, C, tq)    f32
        C = w_ref.shape[0]
        tq = o_ref.shape[2]

        w_bf = w_ref[...].astype(jnp.bfloat16)            # hoisted, reused per step
        bias = b_ref[...]                                 # (C, 1) f32
        ones_row = jnp.ones((1, tk), jnp.float32)         # rowsum(s) via MXU

        for bb in range(b_blk):                           # static; >1 only when n_q == 1
            xq = xq_ref[bb]                               # (C, tq) bf16
            t = jnp.zeros((C, tq), jnp.float32)           # t = x @ s^T accumulator
            rs = jnp.zeros((1, tq), jnp.float32)          # rowsum(s) accumulator

            for kk in range(n_kc):                        # static key chunks
                xk = xk_ref[bb, :, kk * tk:(kk + 1) * tk]     # (C, tk) bf16
                nk = nrm_ref[bb, :, kk * tk:(kk + 1) * tk]    # (1, tk) f32

                # s[q, j] = relu(<xn_q, xn_j>)^gamma  (gamma = 2: two VPU ops)
                s = lax.dot_general(xq, xk, (((0,), (0,)), ((), ())),
                                    preferred_element_type=jnp.float32)   # (tq, tk)
                s = jnp.maximum(s, 0.0)
                s = s * s

                # rowsum(s) for the conv-bias term; ones-matmul keeps it lane-major
                # (no sublane->lane relayout needed).
                rs = rs + lax.dot_general(ones_row, s, (((1,), (1,)), ((), ())),
                                          preferred_element_type=jnp.float32)

                # t += x @ s^T with x = xn * norm folded back in (K = tk, MXU-deep).
                sw = (s * nk).astype(jnp.bfloat16)                        # (tq, tk)
                t = t + lax.dot_general(xk, sw, (((1,), (1,)), ((), ())),
                                        preferred_element_type=jnp.float32)  # (C, tq)

            # 1x1 conv applied AFTER pooling: out = W @ t + b * rowsum(s)
            out = lax.dot_general(w_bf, t.astype(jnp.bfloat16),
                                  (((1,), (0,)), ((), ())),
                                  preferred_element_type=jnp.float32)     # (C, tq)
            o_ref[bb] = (out + bias * rs).astype(o_ref.dtype)

    return kernel


def _vmem_limit_bytes():
    """~3/4 of physical VMEM: 96 MiB on v5e/v6e, 48 MiB on v7x; safe fallback."""
    try:
        cap = int(pltpu.get_tpu_info().vmem_capacity_bytes)
        if cap > 0:
            return cap * 3 // 4
    except Exception:
        pass
    return 48 * 1024 * 1024


def _step_vmem_bytes(C, N_pad, tq, tk, b_blk):
    """Rough per-grid-step VMEM footprint: double-buffered inputs/outputs plus
    the live temporaries of one (tq, tk) key chunk (x1.5 scheduler-overlap slack)."""
    keys = 2 * b_blk * C * N_pad * 2          # bf16 keys block (double-buffered)
    quer = 2 * b_blk * C * tq * 2             # bf16 query tile
    nrm = 2 * b_blk * N_pad * 4               # f32 norms
    wgt = 2 * C * C * 4 + C * C * 2           # f32 weight (x2) + bf16 copy
    outb = 2 * b_blk * C * tq * 4             # f32 output tile
    tmp = (6 * tq * tk + 10 * C * tq + 2 * C * tk + 8 * tq) * 3 // 2
    return keys + quer + nrm + wgt + outb + tmp


def _choose_tiles(C, N_pad, budget):
    """Largest 128-multiple divisors of N_pad that fit the per-chip VMEM budget."""
    units = N_pad // 128
    divs = [128 * d for d in range(1, units + 1) if units % d == 0]   # ascending
    # Pass 1: un-chunked keys (tk = N_pad); take the largest query tile that fits
    # (bigger tq amortizes the ~0.35us/step grid overhead and fills MXU M).
    fit = [tq for tq in divs if _step_vmem_bytes(C, N_pad, tq, N_pad, 1) <= budget]
    if fit:
        return fit[-1], N_pad
    # Pass 2 (very large N): chunk the keys so the (tq, tk) S slab stays bounded.
    tq = 256 if (256 in divs and _step_vmem_bytes(C, N_pad, 256, 128, 1) <= budget) else divs[0]
    fit = [tk for tk in divs if _step_vmem_bytes(C, N_pad, tq, tk, 1) <= budget]
    tk = fit[-1] if fit else divs[0]
    return tq, tk


def ppm_forward(x_nchw, w, b, *, b_blk_max=8, force_tq=None, force_tk=None):
    """x_nchw: (B, C, H, W); w: (C, C) Conv2d(C, C, 1) weight; b: (C,) bias."""
    B, C, H, W = x_nchw.shape
    N = H * W
    x = x_nchw.reshape(B, C, N).astype(jnp.float32)   # channels-first: pure reshape

    # Normalize keys once here (not once per query tile inside the kernel) and
    # ship them as bf16; clamped norms let the kernel rebuild x = xn * norm.
    norm = jnp.maximum(jnp.sqrt(jnp.sum(x * x, axis=1, keepdims=True)), EPS)  # (B,1,N)
    xn = (x / norm).astype(jnp.bfloat16)                                      # (B,C,N)

    # Pad N to a lane multiple: zero columns -> zero xn -> zero s contribution.
    N_pad = ((N + 127) // 128) * 128
    if N_pad != N:
        xn = jnp.pad(xn, ((0, 0), (0, 0), (0, N_pad - N)))
        norm = jnp.pad(norm, ((0, 0), (0, 0), (0, N_pad - N)), constant_values=1.0)

    budget = _vmem_limit_bytes()
    tq, tk = _choose_tiles(C, N_pad, int(budget * 0.9))
    if force_tq is not None:
        tq = force_tq
    if force_tk is not None:
        tk = force_tk
    assert N_pad % tq == 0 and N_pad % tk == 0 and tq % 128 == 0 and tk % 128 == 0
    n_q = N_pad // tq
    n_kc = N_pad // tk

    # Batch blocking only when one query tile covers all of N (small-N path),
    # budgeted against the same per-generation VMEM limit.
    # TODO(synk): output-channel tiling for very large C (>~1k) is not implemented.
    b_blk = 1
    if n_q == 1:
        for d in range(min(B, b_blk_max), 1, -1):
            if B % d == 0 and _step_vmem_bytes(C, N_pad, tq, tk, d) <= int(budget * 0.9):
                b_blk = d
                break

    kernel = _make_ppm_kernel(b_blk, n_kc, tk)

    out = pl.pallas_call(
        kernel,
        out_shape=jax.ShapeDtypeStruct((B, C, N_pad), jnp.float32),
        grid_spec=pltpu.PrefetchScalarGridSpec(
            num_scalar_prefetch=0,
            grid=(B // b_blk, n_q),
            in_specs=[
                # full keys: block index independent of qi -> not re-fetched per tile
                pl.BlockSpec((b_blk, C, N_pad), lambda bi, qi: (bi, 0, 0)),
                # query tile of the same normalized array (lane-aligned, no dyn slicing)
                pl.BlockSpec((b_blk, C, tq), lambda bi, qi: (bi, 0, qi)),
                # clamped key norms
                pl.BlockSpec((b_blk, 1, N_pad), lambda bi, qi: (bi, 0, 0)),
                pl.BlockSpec((C, C), lambda bi, qi: (0, 0)),   # conv weight
                pl.BlockSpec((C, 1), lambda bi, qi: (0, 0)),   # conv bias
            ],
            out_specs=pl.BlockSpec((b_blk, C, tq), lambda bi, qi: (bi, 0, qi)),
        ),
        compiler_params=pltpu.CompilerParams(
            dimension_semantics=("parallel", "parallel"),
            vmem_limit_bytes=budget,
        ),
    )(xn, xn, norm, w, b.reshape(C, 1))

    return out[:, :, :N].reshape(B, C, H, W)


def ppm_reference(x, w, b):
    """Pure-JAX f32 reference mirroring the PyTorch forward (correctness check)."""
    B, C, H, W = x.shape
    N = H * W
    xf = x.reshape(B, C, N).astype(jnp.float32)
    norm = jnp.sqrt(jnp.sum(xf * xf, axis=1, keepdims=True))
    xn = xf / jnp.maximum(norm, EPS)
    s = jnp.einsum('bcm,bcn->bmn', xn, xn)
    s = jnp.maximum(s, 0.0) ** GAMMA
    g = jnp.einsum('oc,bcn->bon', w, xf) + b.reshape(1, C, 1)
    out = jnp.einsum('bmn,bcn->bcm', s, g)
    return out.reshape(B, C, H, W)


if __name__ == "__main__":
    key = jax.random.PRNGKey(0)
    kx, kw, kb, kx3, kw3, kb3 = jax.random.split(key, 6)

    # Small shapes consistent with the module (C x C 1x1 conv over NCHW input).
    B, C, H, W = 2, 32, 16, 16
    x = jax.random.normal(kx, (B, C, H, W), dtype=jnp.float32)
    w = jax.random.normal(kw, (C, C), dtype=jnp.float32) * (1.0 / np.sqrt(C))
    b = jax.random.normal(kb, (C,), dtype=jnp.float32) * 0.01

    ref = ppm_reference(x, w, b)

    # Tolerances loosened vs the f32 reference because the matmuls take bf16
    # operands (f32 accumulation); expected deviation is ~1e-2 relative.
    TOL = dict(rtol=5e-2, atol=5e-2)

    # Path 1: auto tiles -> whole-S query tile, b_blk batch elements per step.
    out1 = ppm_forward(x, w, b)
    jax.block_until_ready(out1)
    np.testing.assert_allclose(np.asarray(out1), np.asarray(ref), **TOL)

    # Path 2: forced query tiling + key chunking (tq = tk = 128 -> grid (2, 2),
    # two key chunks accumulated in-kernel).
    out2 = ppm_forward(x, w, b, force_tq=128, force_tk=128)
    jax.block_until_ready(out2)
    np.testing.assert_allclose(np.asarray(out2), np.asarray(ref), **TOL)

    # Path 3: non-128 spatial size exercises the N-padding path (N = 100 -> 128).
    x3 = jax.random.normal(kx3, (1, 16, 10, 10), dtype=jnp.float32)
    w3 = jax.random.normal(kw3, (16, 16), dtype=jnp.float32) * 0.25
    b3 = jax.random.normal(kb3, (16,), dtype=jnp.float32) * 0.01
    out3 = ppm_forward(x3, w3, b3)
    jax.block_until_ready(out3)
    np.testing.assert_allclose(np.asarray(out3), np.asarray(ppm_reference(x3, w3, b3)), **TOL)

    print("KERNEL_OK")
</pallas_src>

<mosaic_0001>
module attributes {stable_mosaic.version = 11 : i64} {
  func.func @kernel(%arg0: i32, %arg1: i32, %arg2: memref<2x32x256xbf16, #tpu.memory_space<vmem>>, %arg3: memref<2x32x256xbf16, #tpu.memory_space<vmem>>, %arg4: memref<2x1x256xf32, #tpu.memory_space<vmem>>, %arg5: memref<32x32xf32, #tpu.memory_space<vmem>>, %arg6: memref<32x1xf32, #tpu.memory_space<vmem>>, %arg7: memref<2x32x256xf32, #tpu.memory_space<vmem>>) attributes {dimension_semantics = [#tpu.dimension_semantics<parallel>, #tpu.dimension_semantics<parallel>], iteration_bounds = array<i64: 1, 1>, scalar_prefetch = 0 : i64, scratch_operands = 0 : i64, tpu.core_type = #tpu.core_type<tc>, window_params = [{transform_indices = @transform_0, window_bounds = array<i64: 2, 32, 256>}, {transform_indices = @transform_1, window_bounds = array<i64: 2, 32, 256>}, {transform_indices = @transform_2, window_bounds = array<i64: 2, 1, 256>}, {pipeline_mode = #tpu.pipeline_mode<synchronous>, transform_indices = @transform_3, window_bounds = array<i64: 32, 32>}, {pipeline_mode = #tpu.pipeline_mode<synchronous>, transform_indices = @transform_4, window_bounds = array<i64: 32, 1>}, {transform_indices = @transform_5, window_bounds = array<i64: 2, 32, 256>}]} {
    %c0 = arith.constant 0 : index
    %c0_0 = arith.constant 0 : index
    %0 = vector.load %arg5[%c0, %c0_0] : memref<32x32xf32, #tpu.memory_space<vmem>>, vector<32x32xf32>
    %1 = arith.truncf %0 : vector<32x32xf32> to vector<32x32xbf16>
    %c0_1 = arith.constant 0 : index
    %c0_2 = arith.constant 0 : index
    %2 = vector.load %arg6[%c0_1, %c0_2] : memref<32x1xf32, #tpu.memory_space<vmem>>, vector<32x1xf32>
    %cst = arith.constant 1.000000e+00 : f32
    %3 = vector.broadcast %cst : f32 to vector<1x256xf32>
    %c0_3 = arith.constant 0 : index
    %c0_4 = arith.constant 0 : index
    %c0_5 = arith.constant 0 : index
    %4 = vector.load %arg3[%c0_3, %c0_4, %c0_5] : memref<2x32x256xbf16, #tpu.memory_space<vmem>>, vector<1x32x256xbf16>
    %5 = vector.shape_cast %4 : vector<1x32x256xbf16> to vector<32x256xbf16>
    %cst_6 = arith.constant 0.000000e+00 : f32
    %6 = vector.broadcast %cst_6 : f32 to vector<32x256xf32>
    %cst_7 = arith.constant 0.000000e+00 : f32
    %7 = vector.broadcast %cst_7 : f32 to vector<1x256xf32>
    %c0_8 = arith.constant 0 : index
    %c0_9 = arith.constant 0 : index
    %c0_10 = arith.constant 0 : index
    %8 = vector.load %arg2[%c0_8, %c0_9, %c0_10] : memref<2x32x256xbf16, #tpu.memory_space<vmem>>, vector<1x32x256xbf16>
    %9 = vector.shape_cast %8 : vector<1x32x256xbf16> to vector<32x256xbf16>
    %c0_11 = arith.constant 0 : index
    %c0_12 = arith.constant 0 : index
    %c0_13 = arith.constant 0 : index
    %10 = vector.load %arg4[%c0_11, %c0_12, %c0_13] : memref<2x1x256xf32, #tpu.memory_space<vmem>>, vector<1x1x256xf32>
    %11 = vector.shape_cast %10 : vector<1x1x256xf32> to vector<1x256xf32>
    %cst_14 = arith.constant dense<0.000000e+00> : vector<256x256xf32>
    %12 = tpu.matmul %5, %9, %cst_14 {dimension_numbers = #tpu.dot_dimension_numbers<[0], [0], [1], [1], [0, 1, 1, 1], [], []>} : vector<32x256xbf16>, vector<32x256xbf16>, vector<256x256xf32> -> vector<256x256xf32>
    %cst_15 = arith.constant 0.000000e+00 : f32
    %13 = vector.broadcast %cst_15 : f32 to vector<256x256xf32>
    %14 = arith.maximumf %12, %13 : vector<256x256xf32>
    %15 = arith.mulf %14, %14 : vector<256x256xf32>
    %cst_16 = arith.constant dense<0.000000e+00> : vector<1x256xf32>
    %16 = tpu.matmul %3, %15, %cst_16 {dimension_numbers = #tpu.dot_dimension_numbers<[1], [1], [0], [0], [0, 0, 1, 0], [], []>} : vector<1x256xf32>, vector<256x256xf32>, vector<1x256xf32> -> vector<1x256xf32>
    %17 = arith.addf %7, %16 : vector<1x256xf32>
    %18 = vector.broadcast %11 : vector<1x256xf32> to vector<256x256xf32>
    %19 = arith.mulf %15, %18 : vector<256x256xf32>
    %20 = arith.truncf %19 : vector<256x256xf32> to vector<256x256xbf16>
    %cst_17 = arith.constant dense<0.000000e+00> : vector<32x256xf32>
    %21 = tpu.matmul %9, %20, %cst_17 {dimension_numbers = #tpu.dot_dimension_numbers<[1], [1], [0], [0], [0, 0, 1, 0], [], []>} : vector<32x256xbf16>, vector<256x256xbf16>, vector<32x256xf32> -> vector<32x256xf32>
    %22 = arith.addf %6, %21 : vector<32x256xf32>
    %23 = arith.truncf %22 : vector<32x256xf32> to vector<32x256xbf16>
    %cst_18 = arith.constant dense<0.000000e+00> : vector<32x256xf32>
    %24 = tpu.matmul %1, %23, %cst_18 {dimension_numbers = #tpu.dot_dimension_numbers<[1], [0], [0], [1], [0, 0, 1, 1], [], []>} : vector<32x32xbf16>, vector<32x256xbf16>, vector<32x256xf32> -> vector<32x256xf32>
    %25 = vector.broadcast %2 : vector<32x1xf32> to vector<32x256xf32>
    %26 = vector.broadcast %17 : vector<1x256xf32> to vector<32x256xf32>
    %27 = arith.mulf %25, %26 : vector<32x256xf32>
    %28 = arith.addf %24, %27 : vector<32x256xf32>
    %c0_19 = arith.constant 0 : index
    %c0_20 = arith.constant 0 : index
    %c0_21 = arith.constant 0 : index
    %29 = vector.load %arg7[%c0_19, %c0_20, %c0_21] : memref<2x32x256xf32, #tpu.memory_space<vmem>>, vector<1x32x256xf32>
    %30 = vector.shape_cast %29 : vector<1x32x256xf32> to vector<32x256xf32>
    %31 = vector.shape_cast %28 : vector<32x256xf32> to vector<1x32x256xf32>
    tpu.vector_store %arg7[%c0_19, %c0_20, %c0_21], %31 {strides = array<i32>} : memref<2x32x256xf32, #tpu.memory_space<vmem>>, vector<1x32x256xf32>,
    %c1 = arith.constant 1 : index
    %c0_22 = arith.constant 0 : index
    %c0_23 = arith.constant 0 : index
    %32 = vector.load %arg3[%c1, %c0_22, %c0_23] : memref<2x32x256xbf16, #tpu.memory_space<vmem>>, vector<1x32x256xbf16>
    %33 = vector.shape_cast %32 : vector<1x32x256xbf16> to vector<32x256xbf16>
    %cst_24 = arith.constant 0.000000e+00 : f32
    %34 = vector.broadcast %cst_24 : f32 to vector<32x256xf32>
    %cst_25 = arith.constant 0.000000e+00 : f32
    %35 = vector.broadcast %cst_25 : f32 to vector<1x256xf32>
    %c1_26 = arith.constant 1 : index
    %c0_27 = arith.constant 0 : index
    %c0_28 = arith.constant 0 : index
    %36 = vector.load %arg2[%c1_26, %c0_27, %c0_28] : memref<2x32x256xbf16, #tpu.memory_space<vmem>>, vector<1x32x256xbf16>
    %37 = vector.shape_cast %36 : vector<1x32x256xbf16> to vector<32x256xbf16>
    %c1_29 = arith.constant 1 : index
    %c0_30 = arith.constant 0 : index
    %c0_31 = arith.constant 0 : index
    %38 = vector.load %arg4[%c1_29, %c0_30, %c0_31] : memref<2x1x256xf32, #tpu.memory_space<vmem>>, vector<1x1x256xf32>
    %39 = vector.shape_cast %38 : vector<1x1x256xf32> to vector<1x256xf32>
    %cst_32 = arith.constant dense<0.000000e+00> : vector<256x256xf32>
    %40 = tpu.matmul %33, %37, %cst_32 {dimension_numbers = #tpu.dot_dimension_numbers<[0], [0], [1], [1], [0, 1, 1, 1], [], []>} : vector<32x256xbf16>, vector<32x256xbf16>, vector<256x256xf32> -> vector<256x256xf32>
    %cst_33 = arith.constant 0.000000e+00 : f32
    %41 = vector.broadcast %cst_33 : f32 to vector<256x256xf32>
    %42 = arith.maximumf %40, %41 : vector<256x256xf32>
    %43 = arith.mulf %42, %42 : vector<256x256xf32>
    %cst_34 = arith.constant dense<0.000000e+00> : vector<1x256xf32>
    %44 = tpu.matmul %3, %43, %cst_34 {dimension_numbers = #tpu.dot_dimension_numbers<[1], [1], [0], [0], [0, 0, 1, 0], [], []>} : vector<1x256xf32>, vector<256x256xf32>, vector<1x256xf32> -> vector<1x256xf32>
    %45 = arith.addf %35, %44 : vector<1x256xf32>
    %46 = vector.broadcast %39 : vector<1x256xf32> to vector<256x256xf32>
    %47 = arith.mulf %43, %46 : vector<256x256xf32>
    %48 = arith.truncf %47 : vector<256x256xf32> to vector<256x256xbf16>
    %cst_35 = arith.constant dense<0.000000e+00> : vector<32x256xf32>
    %49 = tpu.matmul %37, %48, %cst_35 {dimension_numbers = #tpu.dot_dimension_numbers<[1], [1], [0], [0], [0, 0, 1, 0], [], []>} : vector<32x256xbf16>, vector<256x256xbf16>, vector<32x256xf32> -> vector<32x256xf32>
    %50 = arith.addf %34, %49 : vector<32x256xf32>
    %51 = arith.truncf %50 : vector<32x256xf32> to vector<32x256xbf16>
    %cst_36 = arith.constant dense<0.000000e+00> : vector<32x256xf32>
    %52 = tpu.matmul %1, %51, %cst_36 {dimension_numbers = #tpu.dot_dimension_numbers<[1], [0], [0], [1], [0, 0, 1, 1], [], []>} : vector<32x32xbf16>, vector<32x256xbf16>, vector<32x256xf32> -> vector<32x256xf32>
    %53 = vector.broadcast %2 : vector<32x1xf32> to vector<32x256xf32>
    %54 = vector.broadcast %45 : vector<1x256xf32> to vector<32x256xf32>
    %55 = arith.mulf %53, %54 : vector<32x256xf32>
    %56 = arith.addf %52, %55 : vector<32x256xf32>
    %c1_37 = arith.constant 1 : index
    %c0_38 = arith.constant 0 : index
    %c0_39 = arith.constant 0 : index
    %57 = vector.load %arg7[%c1_37, %c0_38, %c0_39] : memref<2x32x256xf32, #tpu.memory_space<vmem>>, vector<1x32x256xf32>
    %58 = vector.shape_cast %57 : vector<1x32x256xf32> to vector<32x256xf32>
    %59 = vector.shape_cast %56 : vector<32x256xf32> to vector<1x32x256xf32>
    tpu.vector_store %arg7[%c1_37, %c0_38, %c0_39], %59 {strides = array<i32>} : memref<2x32x256xf32, #tpu.memory_space<vmem>>, vector<1x32x256xf32>,
    return
  }
  func.func @transform_0(%arg0: i32, %arg1: i32) -> (i32, i32, i32) {
    %c0_i32 = arith.constant 0 : i32
    %c0_i32_0 = arith.constant 0 : i32
    %c0_i32_1 = arith.constant 0 : i32
    return %arg0, %c0_i32, %c0_i32_0 : i32, i32, i32
  }
  func.func @transform_1(%arg0: i32, %arg1: i32) -> (i32, i32, i32) {
    %c0_i32 = arith.constant 0 : i32
    %c0_i32_0 = arith.constant 0 : i32
    return %arg0, %c0_i32, %arg1 : i32, i32, i32
  }
  func.func @transform_2(%arg0: i32, %arg1: i32) -> (i32, i32, i32) {
    %c0_i32 = arith.constant 0 : i32
    %c0_i32_0 = arith.constant 0 : i32
    %c0_i32_1 = arith.constant 0 : i32
    return %arg0, %c0_i32, %c0_i32_0 : i32, i32, i32
  }
  func.func @transform_3(%arg0: i32, %arg1: i32) -> (i32, i32) {
    %c0_i32 = arith.constant 0 : i32
    %c0_i32_0 = arith.constant 0 : i32
    %c0_i32_1 = arith.constant 0 : i32
    return %c0_i32, %c0_i32_0 : i32, i32
  }
  func.func @transform_4(%arg0: i32, %arg1: i32) -> (i32, i32) {
    %c0_i32 = arith.constant 0 : i32
    %c0_i32_0 = arith.constant 0 : i32
    %c0_i32_1 = arith.constant 0 : i32
    return %c0_i32, %c0_i32_0 : i32, i32
  }
  func.func @transform_5(%arg0: i32, %arg1: i32) -> (i32, i32, i32) {
    %c0_i32 = arith.constant 0 : i32
    %c0_i32_0 = arith.constant 0 : i32
    return %arg0, %c0_i32, %arg1 : i32, i32, i32
  }
}

</mosaic_0001>

<llo_original>
// kernel: tpu_custom_call.1
$region0: #{tpu_custom_call.1}
  #allocation0 [shape = 'u32[]', space=smem, size = 0x4, offset = 0x4, fixed_abs, tag = 'smem constant byte address 0x4 - core index']
  #allocation1 [shape = 'u32[144,128]{1,0:T(1,128)}', space=vmem, size = 0x12000, scoped, tag = 'internal scratch']
  %s0 = inlined_call_operand.hbm [shape: bf16[2,32,256], index: 0, kind: input, shape index: {}]
  %s1 = inlined_call_operand.hbm [shape: bf16[2,32,256], index: 1, kind: input, shape index: {}]
  %s2 = inlined_call_operand.vmem [shape: f32[2,1,256], index: 2, kind: input, shape index: {}]
  %s3 = inlined_call_operand.vmem [shape: f32[32,32], index: 3, kind: input, shape index: {}]
  %s4 = inlined_call_operand.vmem [shape: f32[32,1], index: 4, kind: input, shape index: {}]
  %s5 = inlined_call_operand.hbm [shape: f32[2,32,256], index: 5, kind: output, shape index: {}]
  %s6 = sld [smem:[#allocation0]]
  $region38: #{tpu_custom_call.1} parent=0
    _
  %s8 = ssub.s32 1, %s6
  %s9 = scalar_select 0, %s8, %s6
  $region1: #{tpu_custom_call.1} parent=0
    #allocation2 [shape = 'u8[32768]{0}', space=vmem, size = 0x8000, scoped, tag = 'input window, operand 0, single buffered']
    #allocation3 [shape = 's32[1]{0}', space=sflag, size = 0x4, scoped, tag = 'scoped memory for tpu_custom_call.1']
    #allocation4 [shape = 's32[1]{0}', space=sflag, size = 0x4, scoped, tag = 'scoped memory for tpu_custom_call.1']
    #allocation5 [shape = 'u8[32768]{0}', space=vmem, size = 0x8000, scoped, tag = 'input window, operand 1, single buffered']
    #allocation6 [shape = 's32[1]{0}', space=sflag, size = 0x4, scoped, tag = 'scoped memory for tpu_custom_call.1']
    #allocation7 [shape = 'u8[65536]{0}', space=vmem, size = 0x10000, scoped, tag = 'output window, operand 0, single buffered']
    %10 = vsyncpa [#allocation3], 0
    %11 = vsyncpa [#allocation6], 0
    %12 = vsyncpa [#allocation4], 0
    // Predicated region
    $region2: #{tpu_custom_call.1} parent=1 // pred_check
      _
    $region3: #{tpu_custom_call.1} parent=1 // pred_check_branch
      %14 = sbr.rel (0) target = $region5
    $region4: #{tpu_custom_call.1} parent=1 // pred_region
      %s16 = ssub.s32 1024, 1024
      %17 = vsyncadd [#allocation3], %s16
      %s18 = sshll.u32 [#allocation2], 4
      %s19 = int_to_ptr.vmem [resolvable:$true] %s18
      %24 = dma.hbm_to_vmem [thread:$0]  %s0, 1024, %s19, [#allocation3], 128, 128, 8
    $region5: #{tpu_custom_call.1} parent=1 // pred_fallthru
      _
    // Predicated region
    $region6: #{tpu_custom_call.1} parent=1 // pred_check
      _
    $region7: #{tpu_custom_call.1} parent=1 // pred_check_branch
      %26 = sbr.rel (0) target = $region9
    $region8: #{tpu_custom_call.1} parent=1 // pred_region
      %s28 = ssub.s32 1024, 1024
      %29 = vsyncadd [#allocation6], %s28
      %s30 = sshll.u32 [#allocation5], 4
      %s31 = int_to_ptr.vmem [resolvable:$true] %s30
      %36 = dma.hbm_to_vmem [thread:$0]  %s1, 1024, %s31, [#allocation6], 128, 128, 8
    $region9: #{tpu_custom_call.1} parent=1 // pred_fallthru
      _
    // Predicated region
    $region10: #{tpu_custom_call.1} parent=1 // pred_check
      _
    $region11: #{tpu_custom_call.1} parent=1 // pred_check_branch
      %38 = sbr.rel (0) target = $region13
    $region12: #{tpu_custom_call.1} parent=1 // pred_region
      _
    $region13: #{tpu_custom_call.1} parent=1 // pred_fallthru
      _
    // Predicated region
    $region14: #{tpu_custom_call.1} parent=1 // pred_check
      _
    $region15: #{tpu_custom_call.1} parent=1 // pred_check_branch
      %40 = sbr.rel (0) target = $region17
    $region16: #{tpu_custom_call.1} parent=1 // pred_region
      _
    $region17: #{tpu_custom_call.1} parent=1 // pred_fallthru
      _
    // Predicated region
    $region18: #{tpu_custom_call.1} parent=1 // pred_check
      _
    $region19: #{tpu_custom_call.1} parent=1 // pred_check_branch
      %42 = sbr.rel (0) target = $region21
    $region20: #{tpu_custom_call.1} parent=1 // pred_region
      _
    $region21: #{tpu_custom_call.1} parent=1 // pred_fallthru
      _
    // Predicated region
    $region22: #{tpu_custom_call.1} parent=1 // pred_check
      _
    $region23: #{tpu_custom_call.1} parent=1 // pred_check_branch
      %44 = sbr.rel (0) target = $region25
    $region24: #{tpu_custom_call.1} parent=1 // pred_region
      %45 = dma.done [#allocation3], 1024
    $region25: #{tpu_custom_call.1} parent=1 // pred_fallthru
      _
    // Predicated region
    $region26: #{tpu_custom_call.1} parent=1 // pred_check
      _
    $region27: #{tpu_custom_call.1} parent=1 // pred_check_branch
      %47 = sbr.rel (0) target = $region29
    $region28: #{tpu_custom_call.1} parent=1 // pred_region
      %48 = dma.done [#allocation6], 1024
    $region29: #{tpu_custom_call.1} parent=1 // pred_fallthru
      _
    %v50 = vld [vmem:[%s3] sm:$0xff]
    %v51 = vld [vmem:[%s3 + $0x8] sm:$0xff]
    %v52 = vld [vmem:[%s3 + $0x10] sm:$0xff]
    %v53 = vld [vmem:[%s3 + $0x18] sm:$0xff]
    %v54 = vpack.c.bf16 %v51, %v50
    %v55 = vpack.c.bf16 %v53, %v52
    %v56 = vld [vmem:[%s4] sm:$0xff]
    %v57 = vld [vmem:[%s4 + $0x8] sm:$0xff]
    %v58 = vld [vmem:[%s4 + $0x10] sm:$0xff]
    %v59 = vld [vmem:[%s4 + $0x18] sm:$0xff]
    %v60 = vld [vmem:[#allocation5] sm:$0xff]
    %v61 = vld [vmem:[#allocation5 + $0x8] sm:$0xff]
    %v62 = vld [vmem:[#allocation5 + $0x10] sm:$0xff]
    %v63 = vld [vmem:[#allocation5 + $0x18] sm:$0xff]
    %v64 = vld [vmem:[#allocation2] sm:$0xff]
    %v65 = vld [vmem:[#allocation2 + $0x8] sm:$0xff]
    %v66 = vld [vmem:[#allocation2 + $0x10] sm:$0xff]
    %v67 = vld [vmem:[#allocation2 + $0x18] sm:$0xff]
    %v68 = vld [vmem:[%s2] sm:$0x3]
    %v73 = vunpack.c.l.b16 %v60
    %v74 = vunpack.c.h.b16 %v60
    %v75 = vunpack.c.l.b16 %v61
    %v76 = vunpack.c.h.b16 %v61
    %v77 = vunpack.c.l.b16 %v62
    %v78 = vunpack.c.h.b16 %v62
    %v79 = vunpack.c.l.b16 %v63
    %v80 = vunpack.c.h.b16 %v63
    %v81 = vpack.c.b16 %v75, %v73
    %v82 = vpack.c.b16 %v76, %v74
    %v83 = vpack.c.b16 %v79, %v77
    %v84 = vpack.c.b16 %v80, %v78
    %89 = vxpose.xlu0.c.b16.start [1/8] %v81, 128
    %90 = vxpose.xlu0.c.b16.cont [2/8] %v83, 128
    %91 = vxpose.xlu0.c.b16.cont [3/8] 0, 128
    %92 = vxpose.xlu0.c.b16.cont [4/8] 0, 128
    %93 = vxpose.xlu0.c.b16.cont [5/8] 0, 128
    %94 = vxpose.xlu0.c.b16.cont [6/8] 0, 128
    %95 = vxpose.xlu0.c.b16.cont [7/8] 0, 128
    %96 = vxpose.xlu0.c.b16.end [8/8] 0, 128
    %v97 = vpop.trf.xlu0
    %v98 = vpop.trf.xlu0
    %v99 = vpop.trf.xlu0
    %v100 = vpop.trf.xlu0
    %v101 = vpop.trf.xlu0
    %v102 = vpop.trf.xlu0
    %v103 = vpop.trf.xlu0
    %v104 = vpop.trf.xlu0
    %105 = vxpose.xlu0.c.b16.start [1/8] %v82, 128
    %106 = vxpose.xlu0.c.b16.cont [2/8] %v84, 128
    %107 = vxpose.xlu0.c.b16.cont [3/8] 0, 128
    %108 = vxpose.xlu0.c.b16.cont [4/8] 0, 128
    %109 = vxpose.xlu0.c.b16.cont [5/8] 0, 128
    %110 = vxpose.xlu0.c.b16.cont [6/8] 0, 128
    %111 = vxpose.xlu0.c.b16.cont [7/8] 0, 128
    %112 = vxpose.xlu0.c.b16.end [8/8] 0, 128
    %v113 = vpop.trf.xlu0
    %v114 = vpop.trf.xlu0
    %v115 = vpop.trf.xlu0
    %v116 = vpop.trf.xlu0
    %v117 = vpop.trf.xlu0
    %v118 = vpop.trf.xlu0
    %v119 = vpop.trf.xlu0
    %v120 = vpop.trf.xlu0
    %v125 = vunpack.c.l.b16 %v64
    %v126 = vunpack.c.h.b16 %v64
    %v127 = vunpack.c.l.b16 %v65
    %v128 = vunpack.c.h.b16 %v65
    %v129 = vunpack.c.l.b16 %v66
    %v130 = vunpack.c.h.b16 %v66
    %v131 = vunpack.c.l.b16 %v67
    %v132 = vunpack.c.h.b16 %v67
    %v133 = vpack.c.b16 %v127, %v125
    %v134 = vpack.c.b16 %v128, %v126
    %v135 = vpack.c.b16 %v131, %v129
    %v136 = vpack.c.b16 %v132, %v130
    %vm141 = vcmask 261120
    %v143 = vsel %vm141, %v97, 0
    %v146 = vsel %vm141, %v98, 0
    %v149 = vsel %vm141, %v99, 0
    %v152 = vsel %vm141, %v100, 0
    %v155 = vsel %vm141, %v101, 0
    %v158 = vsel %vm141, %v102, 0
    %v161 = vsel %vm141, %v103, 0
    %v164 = vsel %vm141, %v104, 0
    %v167 = vsel %vm141, %v113, 0
    %v170 = vsel %vm141, %v114, 0
    %v173 = vsel %vm141, %v115, 0
    %v176 = vsel %vm141, %v116, 0
    %v179 = vsel %vm141, %v117, 0
    %v182 = vsel %vm141, %v118, 0
    %v185 = vsel %vm141, %v119, 0
    %v188 = vsel %vm141, %v120, 0
    %190 = vmatprep.subr.bf16.mxu0 0
    %191 = vmatpush1.bf16.msra.mxu0 0
    %192 = vmatprep.subr.bf16.mxu0 0
    %193 = vmatpush1.bf16.msra.mxu0 0
    %194 = vmatprep.subr.bf16.mxu0 0
    %195 = vmatpush1.bf16.msra.mxu0 0
    %196 = vmatprep.subr.bf16.mxu0 0
    %197 = vmatpush1.bf16.msra.mxu0 0
    %198 = vmatprep.subr.bf16.mxu0 0
    %199 = vmatpush1.bf16.msra.mxu0 0
    %200 = vmatprep.subr.bf16.mxu0 0
    %201 = vmatpush1.bf16.msra.mxu0 0
    %202 = vmatprep.subr.bf16.mxu0 %v136
    %203 = vmatpush1.bf16.msra.mxu0 %v135
    %204 = vmatprep.subr.bf16.mxu0 %v134
    %205 = vmatpush1.bf16.msra.mxu0 %v133
    %206 = vmatprep.subr.bf16.mxu0 0
    %207 = vmatpush2.bf16.msra.mxu0 0
    %208 = vmatprep.subr.bf16.mxu0 0
    %209 = vmatpush2.bf16.msra.mxu0 0
    %210 = vmatprep.subr.bf16.mxu0 0
    %211 = vmatpush2.bf16.msra.mxu0 0
    %212 = vmatprep.subr.bf16.mxu0 0
    %213 = vmatpush2.bf16.msra.mxu0 0
    %214 = vmatprep.subr.bf16.mxu0 0
    %215 = vmatpush2.bf16.msra.mxu0 0
    %216 = vmatprep.subr.bf16.mxu0 0
    %217 = vmatpush2.bf16.msra.mxu0 0
    %218 = vmatprep.subr.bf16.mxu0 0
    %219 = vmatpush2.bf16.msra.mxu0 0
    %220 = vmatprep.subr.bf16.mxu0 0
    %221 = vmatpush2.bf16.msra.mxu0 0
    %222 = vmatprep.mubr.bf16.mxu0 0
    %223 = vmatmul.mubr.bf16.gmra.mxu0 %v143
    %v224 = vpop.f32.mrf.mxu0
    %v225 = vadd.f32 0.0, %v224
    %v226 = vpop.f32.mrf.mxu0
    %v227 = vadd.f32 0.0, %v226
    %v228 = vpop.f32.mrf.mxu0
    %v229 = vadd.f32 0.0, %v228
    %v230 = vpop.f32.mrf.mxu0
    %v231 = vadd.f32 0.0, %v230
    %232 = vmatprep.mubr.bf16.mxu0 0
    %233 = vmatmul.mubr.bf16.gmra.mxu0 %v146
    %v234 = vpop.f32.mrf.mxu0
    %v235 = vadd.f32 0.0, %v234
    %v236 = vpop.f32.mrf.mxu0
    %v237 = vadd.f32 0.0, %v236
    %v238 = vpop.f32.mrf.mxu0
    %v239 = vadd.f32 0.0, %v238
    %v240 = vpop.f32.mrf.mxu0
    %v241 = vadd.f32 0.0, %v240
    %242 = vmatprep.mubr.bf16.mxu0 0
    %243 = vmatmul.mubr.bf16.gmra.mxu0 %v149
    %v244 = vpop.f32.mrf.mxu0
    %v245 = vadd.f32 0.0, %v244
    %v246 = vpop.f32.mrf.mxu0
    %v247 = vadd.f32 0.0, %v246
    %v248 = vpop.f32.mrf.mxu0
    %v249 = vadd.f32 0.0, %v248
    %v250 = vpop.f32.mrf.mxu0
    %v251 = vadd.f32 0.0, %v250
    %252 = vmatprep.mubr.bf16.mxu0 0
    %253 = vmatmul.mubr.bf16.gmra.mxu0 %v152
    %v254 = vpop.f32.mrf.mxu0
    %v255 = vadd.f32 0.0, %v254
    %v256 = vpop.f32.mrf.mxu0
    %v257 = vadd.f32 0.0, %v256
    %v258 = vpop.f32.mrf.mxu0
    %v259 = vadd.f32 0.0, %v258
    %v260 = vpop.f32.mrf.mxu0
    %v261 = vadd.f32 0.0, %v260
    %262 = vmatprep.mubr.bf16.mxu0 0
    %263 = vmatmul.mubr.bf16.gmra.mxu0 %v155
    %v264 = vpop.f32.mrf.mxu0
    %v265 = vadd.f32 0.0, %v264
    %v266 = vpop.f32.mrf.mxu0
    %v267 = vadd.f32 0.0, %v266
    %v268 = vpop.f32.mrf.mxu0
    %v269 = vadd.f32 0.0, %v268
    %v270 = vpop.f32.mrf.mxu0
    %v271 = vadd.f32 0.0, %v270
    %272 = vmatprep.mubr.bf16.mxu0 0
    %273 = vmatmul.mubr.bf16.gmra.mxu0 %v158
    %v274 = vpop.f32.mrf.mxu0
    %v275 = vadd.f32 0.0, %v274
    %v276 = vpop.f32.mrf.mxu0
    %v277 = vadd.f32 0.0, %v276
    %v278 = vpop.f32.mrf.mxu0
    %v279 = vadd.f32 0.0, %v278
    %v280 = vpop.f32.mrf.mxu0
    %v281 = vadd.f32 0.0, %v280
    %282 = vmatprep.mubr.bf16.mxu0 0
    %283 = vmatmul.mubr.bf16.gmra.mxu0 %v161
    %v284 = vpop.f32.mrf.mxu0
    %v285 = vadd.f32 0.0, %v284
    %v286 = vpop.f32.mrf.mxu0
    %v287 = vadd.f32 0.0, %v286
    %v288 = vpop.f32.mrf.mxu0
    %v289 = vadd.f32 0.0, %v288
    %v290 = vpop.f32.mrf.mxu0
    %v291 = vadd.f32 0.0, %v290
    %292 = vmatprep.mubr.bf16.mxu0 0
    %293 = vmatmul.mubr.bf16.gmra.mxu0 %v164
    %v294 = vpop.f32.mrf.mxu0
    %v295 = vadd.f32 0.0, %v294
    %v296 = vpop.f32.mrf.mxu0
    %v297 = vadd.f32 0.0, %v296
    %v298 = vpop.f32.mrf.mxu0
    %v299 = vadd.f32 0.0, %v298
    %v300 = vpop.f32.mrf.mxu0
    %v301 = vadd.f32 0.0, %v300
    %302 = vmatprep.mubr.bf16.mxu0 0
    %303 = vmatmul.mubr.bf16.gmra.mxu0 %v167
    %v304 = vpop.f32.mrf.mxu0
    %v305 = vadd.f32 0.0, %v304
    %v306 = vpop.f32.mrf.mxu0
    %v307 = vadd.f32 0.0, %v306
    %v308 = vpop.f32.mrf.mxu0
    %v309 = vadd.f32 0.0, %v308
    %v310 = vpop.f32.mrf.mxu0
    %v311 = vadd.f32 0.0, %v310
    %312 = vmatprep.mubr.bf16.mxu0 0
    %313 = vmatmul.mubr.bf16.gmra.mxu0 %v170
    %v314 = vpop.f32.mrf.mxu0
    %v315 = vadd.f32 0.0, %v314
    %v316 = vpop.f32.mrf.mxu0
    %v317 = vadd.f32 0.0, %v316
    %v318 = vpop.f32.mrf.mxu0
    %v319 = vadd.f32 0.0, %v318
    %v320 = vpop.f32.mrf.mxu0
    %v321 = vadd.f32 0.0, %v320
    %322 = vmatprep.mubr.bf16.mxu0 0
    %323 = vmatmul.mubr.bf16.gmra.mxu0 %v173
    %v324 = vpop.f32.mrf.mxu0
    %v325 = vadd.f32 0.0, %v324
    %v326 = vpop.f32.mrf.mxu0
    %v327 = vadd.f32 0.0, %v326
    %v328 = vpop.f32.mrf.mxu0
    %v329 = vadd.f32 0.0, %v328
    %v330 = vpop.f32.mrf.mxu0
    %v331 = vadd.f32 0.0, %v330
    %332 = vmatprep.mubr.bf16.mxu0 0
    %333 = vmatmul.mubr.bf16.gmra.mxu0 %v176
    %v334 = vpop.f32.mrf.mxu0
    %v335 = vadd.f32 0.0, %v334
    %v336 = vpop.f32.mrf.mxu0
    %v337 = vadd.f32 0.0, %v336
    %v338 = vpop.f32.mrf.mxu0
    %v339 = vadd.f32 0.0, %v338
    %v340 = vpop.f32.mrf.mxu0
    %v341 = vadd.f32 0.0, %v340
    %342 = vmatprep.mubr.bf16.mxu0 0
    %343 = vmatmul.mubr.bf16.gmra.mxu0 %v179
    %v344 = vpop.f32.mrf.mxu0
    %v345 = vadd.f32 0.0, %v344
    %v346 = vpop.f32.mrf.mxu0
    %v347 = vadd.f32 0.0, %v346
    %v348 = vpop.f32.mrf.mxu0
    %v349 = vadd.f32 0.0, %v348
    %v350 = vpop.f32.mrf.mxu0
    %v351 = vadd.f32 0.0, %v350
    %352 = vmatprep.mubr.bf16.mxu0 0
    %353 = vmatmul.mubr.bf16.gmra.mxu0 %v182
    %v354 = vpop.f32.mrf.mxu0
    %v355 = vadd.f32 0.0, %v354
    %v356 = vpop.f32.mrf.mxu0
    %v357 = vadd.f32 0.0, %v356
    %v358 = vpop.f32.mrf.mxu0
    %v359 = vadd.f32 0.0, %v358
    %v360 = vpop.f32.mrf.mxu0
    %v361 = vadd.f32 0.0, %v360
    %362 = vmatprep.mubr.bf16.mxu0 0
    %363 = vmatmul.mubr.bf16.gmra.mxu0 %v185
    %v364 = vpop.f32.mrf.mxu0
    %v365 = vadd.f32 0.0, %v364
    %v366 = vpop.f32.mrf.mxu0
    %v367 = vadd.f32 0.0, %v366
    %v368 = vpop.f32.mrf.mxu0
    %v369 = vadd.f32 0.0, %v368
    %v370 = vpop.f32.mrf.mxu0
    %v371 = vadd.f32 0.0, %v370
    %372 = vmatprep.mubr.bf16.mxu0 0
    %373 = vmatmul.mubr.bf16.gmra.mxu0 %v188
    %v374 = vpop.f32.mrf.mxu0
    %v375 = vadd.f32 0.0, %v374
    %v376 = vpop.f32.mrf.mxu0
    %v377 = vadd.f32 0.0, %v376
    %v378 = vpop.f32.mrf.mxu0
    %v379 = vadd.f32 0.0, %v378
    %v380 = vpop.f32.mrf.mxu0
    %v381 = vadd.f32 0.0, %v380
    %382 = vdwg.mxu0
    %v383 = vmax.f32 %v225, 0.0
    %v384 = vmax.f32 %v227, 0.0
    %v385 = vmax.f32 %v229, 0.0
    %v386 = vmax.f32 %v231, 0.0
    %v387 = vmax.f32 %v235, 0.0
    %v388 = vmax.f32 %v237, 0.0
    %v389 = vmax.f32 %v239, 0.0
    %v390 = vmax.f32 %v241, 0.0
    %v391 = vmax.f32 %v245, 0.0
    %v392 = vmax.f32 %v247, 0.0
    %v393 = vmax.f32 %v249, 0.0
    %v394 = vmax.f32 %v251, 0.0
    %v395 = vmax.f32 %v255, 0.0
    %v396 = vmax.f32 %v257, 0.0
    %v397 = vmax.f32 %v259, 0.0
    %v398 = vmax.f32 %v261, 0.0
    %v399 = vmax.f32 %v265, 0.0
    %v400 = vmax.f32 %v267, 0.0
    %v401 = vmax.f32 %v269, 0.0
    %v402 = vmax.f32 %v271, 0.0
    %v403 = vmax.f32 %v275, 0.0
    %v404 = vmax.f32 %v277, 0.0
    %v405 = vmax.f32 %v279, 0.0
    %v406 = vmax.f32 %v281, 0.0
    %v407 = vmax.f32 %v285, 0.0
    %v408 = vmax.f32 %v287, 0.0
    %v409 = vmax.f32 %v289, 0.0
    %v410 = vmax.f32 %v291, 0.0
    %v411 = vmax.f32 %v295, 0.0
    %v412 = vmax.f32 %v297, 0.0
    %v413 = vmax.f32 %v299, 0.0
    %v414 = vmax.f32 %v301, 0.0
    %v415 = vmax.f32 %v305, 0.0
    %v416 = vmax.f32 %v307, 0.0
    %v417 = vmax.f32 %v309, 0.0
    %v418 = vmax.f32 %v311, 0.0
    %v419 = vmax.f32 %v315, 0.0
    %v420 = vmax.f32 %v317, 0.0
    %v421 = vmax.f32 %v319, 0.0
    %v422 = vmax.f32 %v321, 0.0
    %v423 = vmax.f32 %v325, 0.0
    %v424 = vmax.f32 %v327, 0.0
    %v425 = vmax.f32 %v329, 0.0
    %v426 = vmax.f32 %v331, 0.0
    %v427 = vmax.f32 %v335, 0.0
    %v428 = vmax.f32 %v337, 0.0
    %v429 = vmax.f32 %v339, 0.0
    %v430 = vmax.f32 %v341, 0.0
    %v431 = vmax.f32 %v345, 0.0
    %v432 = vmax.f32 %v347, 0.0
    %v433 = vmax.f32 %v349, 0.0
    %v434 = vmax.f32 %v351, 0.0
    %v435 = vmax.f32 %v355, 0.0
    %v436 = vmax.f32 %v357, 0.0
    %v437 = vmax.f32 %v359, 0.0
    %v438 = vmax.f32 %v361, 0.0
    %v439 = vmax.f32 %v365, 0.0
    %v440 = vmax.f32 %v367, 0.0
    %v441 = vmax.f32 %v369, 0.0
    %v442 = vmax.f32 %v371, 0.0
    %v443 = vmax.f32 %v375, 0.0
    %v444 = vmax.f32 %v377, 0.0
    %v445 = vmax.f32 %v379, 0.0
    %v446 = vmax.f32 %v381, 0.0
    %v447 = vmul.f32 %v383, %v383
    %v448 = vmul.f32 %v384, %v384
    %v449 = vmul.f32 %v385, %v385
    %v450 = vmul.f32 %v386, %v386
    %v451 = vmul.f32 %v387, %v387
    %v452 = vmul.f32 %v388, %v388
    %v453 = vmul.f32 %v389, %v389
    %v454 = vmul.f32 %v390, %v390
    %v455 = vmul.f32 %v391, %v391
    %v456 = vmul.f32 %v392, %v392
    %v457 = vmul.f32 %v393, %v393
    %v458 = vmul.f32 %v394, %v394
    %v459 = vmul.f32 %v395, %v395
    %v460 = vmul.f32 %v396, %v396
    %v461 = vmul.f32 %v397, %v397
    %v462 = vmul.f32 %v398, %v398
    %v463 = vmul.f32 %v399, %v399
    %v464 = vmul.f32 %v400, %v400
    %v465 = vmul.f32 %v401, %v401
    %v466 = vmul.f32 %v402, %v402
    %v467 = vmul.f32 %v403, %v403
    %v468 = vmul.f32 %v404, %v404
    %v469 = vmul.f32 %v405, %v405
    %v470 = vmul.f32 %v406, %v406
    %v471 = vmul.f32 %v407, %v407
    %v472 = vmul.f32 %v408, %v408
    %v473 = vmul.f32 %v409, %v409
    %v474 = vmul.f32 %v410, %v410
    %v475 = vmul.f32 %v411, %v411
    %v476 = vmul.f32 %v412, %v412
    %v477 = vmul.f32 %v413, %v413
    %v478 = vmul.f32 %v414, %v414
    %v479 = vmul.f32 %v415, %v415
    %v480 = vmul.f32 %v416, %v416
    %v481 = vmul.f32 %v417, %v417
    %v482 = vmul.f32 %v418, %v418
    %v483 = vmul.f32 %v419, %v419
    %v484 = vmul.f32 %v420, %v420
    %v485 = vmul.f32 %v421, %v421
    %v486 = vmul.f32 %v422, %v422
    %v487 = vmul.f32 %v423, %v423
    %v488 = vmul.f32 %v424, %v424
    %v489 = vmul.f32 %v425, %v425
    %v490 = vmul.f32 %v426, %v426
    %v491 = vmul.f32 %v427, %v427
    %v492 = vmul.f32 %v428, %v428
    %v493 = vmul.f32 %v429, %v429
    %v494 = vmul.f32 %v430, %v430
    %v495 = vmul.f32 %v431, %v431
    %v496 = vmul.f32 %v432, %v432
    %v497 = vmul.f32 %v433, %v433
    %v498 = vmul.f32 %v434, %v434
    %v499 = vmul.f32 %v435, %v435
    %v500 = vmul.f32 %v436, %v436
    %v501 = vmul.f32 %v437, %v437
    %v502 = vmul.f32 %v438, %v438
    %v503 = vmul.f32 %v439, %v439
    %v504 = vmul.f32 %v440, %v440
    %v505 = vmul.f32 %v441, %v441
    %v506 = vmul.f32 %v442, %v442
    %v507 = vmul.f32 %v443, %v443
    %v508 = vmul.f32 %v444, %v444
    %v509 = vmul.f32 %v445, %v445
    %v510 = vmul.f32 %v446, %v446
    %511 = vmatprep.subr.mxu0 %v478
    %512 = vmatpush1.xpose.msra.mxu0 %v477
    %513 = vmatprep.subr.mxu0 %v476
    %514 = vmatpush1.xpose.msra.mxu0 %v475
    %515 = vmatprep.subr.mxu0 %v474
    %516 = vmatpush1.xpose.msra.mxu0 %v473
    %517 = vmatprep.subr.mxu0 %v472
    %518 = vmatpush1.xpose.msra.mxu0 %v471
    %519 = vmatprep.subr.mxu0 %v470
    %520 = vmatpush1.xpose.msra.mxu0 %v469
    %521 = vmatprep.subr.mxu0 %v468
    %522 = vmatpush1.xpose.msra.mxu0 %v467
    %523 = vmatprep.subr.mxu0 %v466
    %524 = vmatpush1.xpose.msra.mxu0 %v465
    %525 = vmatprep.subr.mxu0 %v464
    %526 = vmatpush1.xpose.msra.mxu0 %v463
    %527 = vmatprep.subr.mxu0 %v462
    %528 = vmatpush1.xpose.msra.mxu0 %v461
    %529 = vmatprep.subr.mxu0 %v460
    %530 = vmatpush1.xpose.msra.mxu0 %v459
    %531 = vmatprep.subr.mxu0 %v458
    %532 = vmatpush1.xpose.msra.mxu0 %v457
    %533 = vmatprep.subr.mxu0 %v456
    %534 = vmatpush1.xpose.msra.mxu0 %v455
    %535 = vmatprep.subr.mxu0 %v454
    %536 = vmatpush1.xpose.msra.mxu0 %v453
    %537 = vmatprep.subr.mxu0 %v452
    %538 = vmatpush1.xpose.msra.mxu0 %v451
    %539 = vmatprep.subr.mxu0 %v450
    %540 = vmatpush1.xpose.msra.mxu0 %v449
    %541 = vmatprep.subr.mxu0 %v448
    %542 = vmatpush1.xpose.msra.mxu0 %v447
    %543 = vmatprep.subr.mxu0 %v510
    %544 = vmatpush2.xpose.msra.mxu0 %v509
    %545 = vmatprep.subr.mxu0 %v508
    %546 = vmatpush2.xpose.msra.mxu0 %v507
    %547 = vmatprep.subr.mxu0 %v506
    %548 = vmatpush2.xpose.msra.mxu0 %v505
    %549 = vmatprep.subr.mxu0 %v504
    %550 = vmatpush2.xpose.msra.mxu0 %v503
    %551 = vmatprep.subr.mxu0 %v502
    %552 = vmatpush2.xpose.msra.mxu0 %v501
    %553 = vmatprep.subr.mxu0 %v500
    %554 = vmatpush2.xpose.msra.mxu0 %v499
    %555 = vmatprep.subr.mxu0 %v498
    %556 = vmatpush2.xpose.msra.mxu0 %v497
    %557 = vmatprep.subr.mxu0 %v496
    %558 = vmatpush2.xpose.msra.mxu0 %v495
    %559 = vmatprep.subr.mxu0 %v494
    %560 = vmatpush2.xpose.msra.mxu0 %v493
    %561 = vmatprep.subr.mxu0 %v492
    %562 = vmatpush2.xpose.msra.mxu0 %v491
    %563 = vmatprep.subr.mxu0 %v490
    %564 = vmatpush2.xpose.msra.mxu0 %v489
    %565 = vmatprep.subr.mxu0 %v488
    %566 = vmatpush2.xpose.msra.mxu0 %v487
    %567 = vmatprep.subr.mxu0 %v486
    %568 = vmatpush2.xpose.msra.mxu0 %v485
    %569 = vmatprep.subr.mxu0 %v484
    %570 = vmatpush2.xpose.msra.mxu0 %v483
    %571 = vmatprep.subr.mxu0 %v482
    %572 = vmatpush2.xpose.msra.mxu0 %v481
    %573 = vmatprep.subr.mxu0 %v480
    %574 = vmatpush2.xpose.msra.mxu0 %v479
    %575 = vmatprep.mubr.f32.mxu0 1.0
    %576 = vmatmul.mubr.f32.gmra.mxu0 1.0
    %v577 = vpop.f32.mrf.mxu0
    %v578 = vadd.f32 0.0, %v577
    %v579 = vpop.f32.mrf.mxu0
    %v580 = vadd.f32 0.0, %v579
    %581 = vdwg.mxu0
    %v583 = vlaneseq
    %v584 = vshrl.u32 %v583, 7
    %v585 = vsub.s32 0, %v584
    %v586 = vrot.slane %v68, %v585
    %v587 = vlaneseq
    %v588 = vshrl.u32 %v587, 7
    %v589 = vsub.s32 1, %v588
    %v590 = vrot.slane %v68, %v589
    %v593 = vmul.f32 %v447, %v586
    %v594 = vmul.f32 %v448, %v590
    %v595 = vmul.f32 %v449, %v586
    %v596 = vmul.f32 %v450, %v590
    %v597 = vmul.f32 %v451, %v586
    %v598 = vmul.f32 %v452, %v590
    %v599 = vmul.f32 %v453, %v586
    %v600 = vmul.f32 %v454, %v590
    %v601 = vmul.f32 %v455, %v586
    %v602 = vmul.f32 %v456, %v590
    %v603 = vmul.f32 %v457, %v586
    %v604 = vmul.f32 %v458, %v590
    %v605 = vmul.f32 %v459, %v586
    %v606 = vmul.f32 %v460, %v590
    %v607 = vmul.f32 %v461, %v586
    %v608 = vmul.f32 %v462, %v590
    %v609 = vmul.f32 %v463, %v586
    %v610 = vmul.f32 %v464, %v590
    %v611 = vmul.f32 %v465, %v586
    %v612 = vmul.f32 %v466, %v590
    %v613 = vmul.f32 %v467, %v586
    %v614 = vmul.f32 %v468, %v590
    %v615 = vmul.f32 %v469, %v586
    %v616 = vmul.f32 %v470, %v590
    %v617 = vmul.f32 %v471, %v586
    %v618 = vmul.f32 %v472, %v590
    %v619 = vmul.f32 %v473, %v586
    %v620 = vmul.f32 %v474, %v590
    %v621 = vmul.f32 %v475, %v586
    %v622 = vmul.f32 %v476, %v590
    %v623 = vmul.f32 %v477, %v586
    %v624 = vmul.f32 %v478, %v590
    %v625 = vmul.f32 %v479, %v586
    %v626 = vmul.f32 %v480, %v590
    %v627 = vmul.f32 %v481, %v586
    %v628 = vmul.f32 %v482, %v590
    %v629 = vmul.f32 %v483, %v586
    %v630 = vmul.f32 %v484, %v590
    %v631 = vmul.f32 %v485, %v586
    %v632 = vmul.f32 %v486, %v590
    %v633 = vmul.f32 %v487, %v586
    %v634 = vmul.f32 %v488, %v590
    %v635 = vmul.f32 %v489, %v586
    %v636 = vmul.f32 %v490, %v590
    %v637 = vmul.f32 %v491, %v586
    %v638 = vmul.f32 %v492, %v590
    %v639 = vmul.f32 %v493, %v586
    %v640 = vmul.f32 %v494, %v590
    %v641 = vmul.f32 %v495, %v586
    %v642 = vmul.f32 %v496, %v590
    %v643 = vmul.f32 %v497, %v586
    %v644 = vmul.f32 %v498, %v590
    %v645 = vmul.f32 %v499, %v586
    %v646 = vmul.f32 %v500, %v590
    %v647 = vmul.f32 %v501, %v586
    %v648 = vmul.f32 %v502, %v590
    %v649 = vmul.f32 %v503, %v586
    %v650 = vmul.f32 %v504, %v590
    %v651 = vmul.f32 %v505, %v586
    %v652 = vmul.f32 %v506, %v590
    %v653 = vmul.f32 %v507, %v586
    %v654 = vmul.f32 %v508, %v590
    %v655 = vmul.f32 %v509, %v586
    %v656 = vmul.f32 %v510, %v590
    %v657 = vpack.c.bf16 %v595, %v593
    %v658 = vpack.c.bf16 %v596, %v594
    %v659 = vpack.c.bf16 %v599, %v597
    %v660 = vpack.c.bf16 %v600, %v598
    %v661 = vpack.c.bf16 %v603, %v601
    %v662 = vpack.c.bf16 %v604, %v602
    %v663 = vpack.c.bf16 %v607, %v605
    %v664 = vpack.c.bf16 %v608, %v606
    %v665 = vpack.c.bf16 %v611, %v609
    %v666 = vpack.c.bf16 %v612, %v610
    %v667 = vpack.c.bf16 %v615, %v613
    %v668 = vpack.c.bf16 %v616, %v614
    %v669 = vpack.c.bf16 %v619, %v617
    %v670 = vpack.c.bf16 %v620, %v618
    %v671 = vpack.c.bf16 %v623, %v621
    %v672 = vpack.c.bf16 %v624, %v622
    %v673 = vpack.c.bf16 %v627, %v625
    %v674 = vpack.c.bf16 %v628, %v626
    %v675 = vpack.c.bf16 %v631, %v629
    %v676 = vpack.c.bf16 %v632, %v630
    %v677 = vpack.c.bf16 %v635, %v633
    %v678 = vpack.c.bf16 %v636, %v634
    %v679 = vpack.c.bf16 %v639, %v637
    %v680 = vpack.c.bf16 %v640, %v638
    %v681 = vpack.c.bf16 %v643, %v641
    %v682 = vpack.c.bf16 %v644, %v642
    %v683 = vpack.c.bf16 %v647, %v645
    %v684 = vpack.c.bf16 %v648, %v646
    %v685 = vpack.c.bf16 %v651, %v649
    %v686 = vpack.c.bf16 %v652, %v650
    %v687 = vpack.c.bf16 %v655, %v653
    %v688 = vpack.c.bf16 %v656, %v654
    %689 = vmatprep.subr.bf16.mxu0 %v672
    %690 = vmatpush1.bf16.xpose.msra.mxu0 %v671
    %691 = vmatprep.subr.bf16.mxu0 %v670
    %692 = vmatpush1.bf16.xpose.msra.mxu0 %v669
    %693 = vmatprep.subr.bf16.mxu0 %v668
    %694 = vmatpush1.bf16.xpose.msra.mxu0 %v667
    %695 = vmatprep.subr.bf16.mxu0 %v666
    %696 = vmatpush1.bf16.xpose.msra.mxu0 %v665
    %697 = vmatprep.subr.bf16.mxu0 %v664
    %698 = vmatpush1.bf16.xpose.msra.mxu0 %v663
    %699 = vmatprep.subr.bf16.mxu0 %v662
    %700 = vmatpush1.bf16.xpose.msra.mxu0 %v661
    %701 = vmatprep.subr.bf16.mxu0 %v660
    %702 = vmatpush1.bf16.xpose.msra.mxu0 %v659
    %703 = vmatprep.subr.bf16.mxu0 %v658
    %704 = vmatpush1.bf16.xpose.msra.mxu0 %v657
    %705 = vmatprep.subr.bf16.mxu0 %v688
    %706 = vmatpush2.bf16.xpose.msra.mxu0 %v687
    %707 = vmatprep.subr.bf16.mxu0 %v686
    %708 = vmatpush2.bf16.xpose.msra.mxu0 %v685
    %709 = vmatprep.subr.bf16.mxu0 %v684
    %710 = vmatpush2.bf16.xpose.msra.mxu0 %v683
    %711 = vmatprep.subr.bf16.mxu0 %v682
    %712 = vmatpush2.bf16.xpose.msra.mxu0 %v681
    %713 = vmatprep.subr.bf16.mxu0 %v680
    %714 = vmatpush2.bf16.xpose.msra.mxu0 %v679
    %715 = vmatprep.subr.bf16.mxu0 %v678
    %716 = vmatpush2.bf16.xpose.msra.mxu0 %v677
    %717 = vmatprep.subr.bf16.mxu0 %v676
    %718 = vmatpush2.bf16.xpose.msra.mxu0 %v675
    %719 = vmatprep.subr.bf16.mxu0 %v674
    %720 = vmatpush2.bf16.xpose.msra.mxu0 %v673
    %721 = vmatprep.mubr.bf16.mxu0 %v134
    %722 = vmatmul.mubr.bf16.gmra.mxu0 %v133
    %v723 = vpop.f32.mrf.mxu0
    %v724 = vadd.f32 0.0, %v723
    %v725 = vpop.f32.mrf.mxu0
    %v726 = vadd.f32 0.0, %v725
    %v727 = vpop.f32.mrf.mxu0
    %v728 = vadd.f32 0.0, %v727
    %v729 = vpop.f32.mrf.mxu0
    %v730 = vadd.f32 0.0, %v729
    %731 = vmatprep.mubr.bf16.mxu0 %v136
    %732 = vmatmul.mubr.bf16.gmra.mxu0 %v135
    %v733 = vpop.f32.mrf.mxu0
    %v734 = vadd.f32 0.0, %v733
    %v735 = vpop.f32.mrf.mxu0
    %v736 = vadd.f32 0.0, %v735
    %v737 = vpop.f32.mrf.mxu0
    %v738 = vadd.f32 0.0, %v737
    %v739 = vpop.f32.mrf.mxu0
    %v740 = vadd.f32 0.0, %v739
    %741 = vdwg.mxu0
    %v742 = vpack.c.bf16 %v728, %v724
    %v743 = vpack.c.bf16 %v730, %v726
    %v744 = vpack.c.bf16 %v738, %v734
    %v745 = vpack.c.bf16 %v740, %v736
    %747 = vset.pattern.permute.xlu0 0
    %748 = vperm.xlu0 %747, %v56
    %v749 = vpop.permute.xlu0 %748
    %752 = vset.pattern.permute.xlu0 0
    %753 = vperm.xlu0 %752, %v57
    %v754 = vpop.permute.xlu0 %753
    %757 = vset.pattern.permute.xlu0 0
    %758 = vperm.xlu0 %757, %v58
    %v759 = vpop.permute.xlu0 %758
    %762 = vset.pattern.permute.xlu0 0
    %763 = vperm.xlu0 %762, %v59
    %v764 = vpop.permute.xlu0 %763
    %v766 = vlaneseq
    %v767 = vshrl.u32 %v766, 7
    %v768 = vsub.s32 0, %v767
    %v769 = vrot.slane %v578, %v768
    %v770 = vlaneseq
    %v771 = vshrl.u32 %v770, 7
    %v772 = vsub.s32 0, %v771
    %v773 = vrot.slane %v580, %v772
    %v774 = vmul.f32 %v749, %v769
    %v775 = vmul.f32 %v749, %v773
    %v776 = vmul.f32 %v754, %v769
    %v777 = vmul.f32 %v754, %v773
    %v778 = vmul.f32 %v759, %v769
    %v779 = vmul.f32 %v759, %v773
    %v780 = vmul.f32 %v764, %v769
    %v781 = vmul.f32 %v764, %v773
    %v783 = vsel %vm141, %v54, 0
    %v786 = vsel %vm141, %v55, 0
    %788 = vmatprep.subr.bf16.mxu0 0
    %789 = vmatpush1.bf16.msra.mxu0 0
    %790 = vmatprep.subr.bf16.mxu0 0
    %791 = vmatpush1.bf16.msra.mxu0 0
    %792 = vmatprep.subr.bf16.mxu0 0
    %793 = vmatpush1.bf16.msra.mxu0 0
    %794 = vmatprep.subr.bf16.mxu0 0
    %795 = vmatpush1.bf16.msra.mxu0 0
    %796 = vmatprep.subr.bf16.mxu0 0
    %797 = vmatpush1.bf16.msra.mxu0 0
    %798 = vmatprep.subr.bf16.mxu0 0
    %799 = vmatpush1.bf16.msra.mxu0 0
    %800 = vmatprep.subr.bf16.mxu0 %v745
    %801 = vmatpush1.bf16.msra.mxu0 %v744
    %802 = vmatprep.subr.bf16.mxu0 %v743
    %803 = vmatpush1.bf16.msra.mxu0 %v742
    %804 = vmatprep.subr.bf16.mxu0 0
    %805 = vmatpush2.bf16.msra.mxu0 0
    %806 = vmatprep.subr.bf16.mxu0 0
    %807 = vmatpush2.bf16.msra.mxu0 0
    %808 = vmatprep.subr.bf16.mxu0 0
    %809 = vmatpush2.bf16.msra.mxu0 0
    %810 = vmatprep.subr.bf16.mxu0 0
    %811 = vmatpush2.bf16.msra.mxu0 0
    %812 = vmatprep.subr.bf16.mxu0 0
    %813 = vmatpush2.bf16.msra.mxu0 0
    %814 = vmatprep.subr.bf16.mxu0 0
    %815 = vmatpush2.bf16.msra.mxu0 0
    %816 = vmatprep.subr.bf16.mxu0 0
    %817 = vmatpush2.bf16.msra.mxu0 0
    %818 = vmatprep.subr.bf16.mxu0 0
    %819 = vmatpush2.bf16.msra.mxu0 0
    %820 = vmatprep.mubr.bf16.mxu0 0
    %821 = vmatmul.mubr.bf16.gmra.mxu0 %v783
    %v822 = vpop.f32.mrf.mxu0
    %v823 = vadd.f32 %v774, %v822
    %v824 = vpop.f32.mrf.mxu0
    %v825 = vadd.f32 %v775, %v824
    %v826 = vpop.f32.mrf.mxu0
    %v827 = vadd.f32 %v776, %v826
    %v828 = vpop.f32.mrf.mxu0
    %v829 = vadd.f32 %v777, %v828
    %830 = vmatprep.mubr.bf16.mxu0 0
    %831 = vmatmul.mubr.bf16.gmra.mxu0 %v786
    %v832 = vpop.f32.mrf.mxu0
    %v833 = vadd.f32 %v778, %v832
    %v834 = vpop.f32.mrf.mxu0
    %v835 = vadd.f32 %v779, %v834
    %v836 = vpop.f32.mrf.mxu0
    %v837 = vadd.f32 %v780, %v836
    %v838 = vpop.f32.mrf.mxu0
    %v839 = vadd.f32 %v781, %v838
    %840 = vdwg.mxu0
    %841 = vst [vmem:[#allocation7] sm:$0xff] %v823
    %842 = vst [vmem:[#allocation7 + $0x8] sm:$0xff] %v825
    %843 = vst [vmem:[#allocation7 + $0x10] sm:$0xff] %v827
    %844 = vst [vmem:[#allocation7 + $0x18] sm:$0xff] %v829
    %845 = vst [vmem:[#allocation7 + $0x20] sm:$0xff] %v833
    %846 = vst [vmem:[#allocation7 + $0x28] sm:$0xff] %v835
    %847 = vst [vmem:[#allocation7 + $0x30] sm:$0xff] %v837
    %848 = vst [vmem:[#allocation7 + $0x38] sm:$0xff] %v839
    %s849 = scalar_lea.vmem [#allocation5], 32
    %v850 = vld [vmem:[%s849] sm:$0xff]
    %v851 = vld [vmem:[%s849 + $0x8] sm:$0xff]
    %v852 = vld [vmem:[%s849 + $0x10] sm:$0xff]
    %v853 = vld [vmem:[%s849 + $0x18] sm:$0xff]
    %s854 = scalar_lea.vmem [#allocation2], 32
    %v855 = vld [vmem:[%s854] sm:$0xff]
    %v856 = vld [vmem:[%s854 + $0x8] sm:$0xff]
    %v857 = vld [vmem:[%s854 + $0x10] sm:$0xff]
    %v858 = vld [vmem:[%s854 + $0x18] sm:$0xff]
    %s859 = scalar_lea.vmem %s2, 2
    %v860 = vld [vmem:[%s859] sm:$0x3]
    %v865 = vunpack.c.l.b16 %v850
    %v866 = vunpack.c.h.b16 %v850
    %v867 = vunpack.c.l.b16 %v851
    %v868 = vunpack.c.h.b16 %v851
    %v869 = vunpack.c.l.b16 %v852
    %v870 = vunpack.c.h.b16 %v852
    %v871 = vunpack.c.l.b16 %v853
    %v872 = vunpack.c.h.b16 %v853
    %v873 = vpack.c.b16 %v867, %v865
    %v874 = vpack.c.b16 %v868, %v866
    %v875 = vpack.c.b16 %v871, %v869
    %v876 = vpack.c.b16 %v872, %v870
    %881 = vxpose.xlu0.c.b16.start [1/8] %v873, 128
    %882 = vxpose.xlu0.c.b16.cont [2/8] %v875, 128
    %883 = vxpose.xlu0.c.b16.cont [3/8] 0, 128
    %884 = vxpose.xlu0.c.b16.cont [4/8] 0, 128
    %885 = vxpose.xlu0.c.b16.cont [5/8] 0, 128
    %886 = vxpose.xlu0.c.b16.cont [6/8] 0, 128
    %887 = vxpose.xlu0.c.b16.cont [7/8] 0, 128
    %888 = vxpose.xlu0.c.b16.end [8/8] 0, 128
    %v889 = vpop.trf.xlu0
    %v890 = vpop.trf.xlu0
    %v891 = vpop.trf.xlu0
    %v892 = vpop.trf.xlu0
    %v893 = vpop.trf.xlu0
    %v894 = vpop.trf.xlu0
    %v895 = vpop.trf.xlu0
    %v896 = vpop.trf.xlu0
    %897 = vxpose.xlu0.c.b16.start [1/8] %v874, 128
    %898 = vxpose.xlu0.c.b16.cont [2/8] %v876, 128
    %899 = vxpose.xlu0.c.b16.cont [3/8] 0, 128
    %900 = vxpose.xlu0.c.b16.cont [4/8] 0, 128
    %901 = vxpose.xlu0.c.b16.cont [5/8] 0, 128
    %902 = vxpose.xlu0.c.b16.cont [6/8] 0, 128
    %903 = vxpose.xlu0.c.b16.cont [7/8] 0, 128
    %904 = vxpose.xlu0.c.b16.end [8/8] 0, 128
    %v905 = vpop.trf.xlu0
    %v906 = vpop.trf.xlu0
    %v907 = vpop.trf.xlu0
    %v908 = vpop.trf.xlu0
    %v909 = vpop.trf.xlu0
    %v910 = vpop.trf.xlu0
    %v911 = vpop.trf.xlu0
    %v912 = vpop.trf.xlu0
    %v917 = vunpack.c.l.b16 %v855
    %v918 = vunpack.c.h.b16 %v855
    %v919 = vunpack.c.l.b16 %v856
    %v920 = vunpack.c.h.b16 %v856
    %v921 = vunpack.c.l.b16 %v857
    %v922 = vunpack.c.h.b16 %v857
    %v923 = vunpack.c.l.b16 %v858
    %v924 = vunpack.c.h.b16 %v858
    %v925 = vpack.c.b16 %v919, %v917
    %v926 = vpack.c.b16 %v920, %v918
    %v927 = vpack.c.b16 %v923, %v921
    %v928 = vpack.c.b16 %v924, %v922
    %v934 = vsel %vm141, %v889, 0
    %v937 = vsel %vm141, %v890, 0
    %v940 = vsel %vm141, %v891, 0
    %v943 = vsel %vm141, %v892, 0
    %v946 = vsel %vm141, %v893, 0
    %v949 = vsel %vm141, %v894, 0
    %v952 = vsel %vm141, %v895, 0
    %v955 = vsel %vm141, %v896, 0
    %v958 = vsel %vm141, %v905, 0
    %v961 = vsel %vm141, %v906, 0
    %v964 = vsel %vm141, %v907, 0
    %v967 = vsel %vm141, %v908, 0
    %v970 = vsel %vm141, %v909, 0
    %v973 = vsel %vm141, %v910, 0
    %v976 = vsel %vm141, %v911, 0
    %v979 = vsel %vm141, %v912, 0
    %981 = vmatprep.subr.bf16.mxu0 0
    %982 = vmatpush1.bf16.msra.mxu0 0
    %983 = vmatprep.subr.bf16.mxu0 0
    %984 = vmatpush1.bf16.msra.mxu0 0
    %985 = vmatprep.subr.bf16.mxu0 0
    %986 = vmatpush1.bf16.msra.mxu0 0
    %987 = vmatprep.subr.bf16.mxu0 0
    %988 = vmatpush1.bf16.msra.mxu0 0
    %989 = vmatprep.subr.bf16.mxu0 0
    %990 = vmatpush1.bf16.msra.mxu0 0
    %991 = vmatprep.subr.bf16.mxu0 0
    %992 = vmatpush1.bf16.msra.mxu0 0
    %993 = vmatprep.subr.bf16.mxu0 %v928
    %994 = vmatpush1.bf16.msra.mxu0 %v927
    %995 = vmatprep.subr.bf16.mxu0 %v926
    %996 = vmatpush1.bf16.msra.mxu0 %v925
    %997 = vmatprep.subr.bf16.mxu0 0
    %998 = vmatpush2.bf16.msra.mxu0 0
    %999 = vmatprep.subr.bf16.mxu0 0
    %1000 = vmatpush2.bf16.msra.mxu0 0
    %1001 = vmatprep.subr.bf16.mxu0 0
    %1002 = vmatpush2.bf16.msra.mxu0 0
    %1003 = vmatprep.subr.bf16.mxu0 0
    %1004 = vmatpush2.bf16.msra.mxu0 0
    %1005 = vmatprep.subr.bf16.mxu0 0
    %1006 = vmatpush2.bf16.msra.mxu0 0
    %1007 = vmatprep.subr.bf16.mxu0 0
    %1008 = vmatpush2.bf16.msra.mxu0 0
    %1009 = vmatprep.subr.bf16.mxu0 0
    %1010 = vmatpush2.bf16.msra.mxu0 0
    %1011 = vmatprep.subr.bf16.mxu0 0
    %1012 = vmatpush2.bf16.msra.mxu0 0
    %1013 = vmatprep.mubr.bf16.mxu0 0
    %1014 = vmatmul.mubr.bf16.gmra.mxu0 %v934
    %v1015 = vpop.f32.mrf.mxu0
    %v1016 = vadd.f32 0.0, %v1015
    %v1017 = vpop.f32.mrf.mxu0
    %v1018 = vadd.f32 0.0, %v1017
    %v1019 = vpop.f32.mrf.mxu0
    %v1020 = vadd.f32 0.0, %v1019
    %v1021 = vpop.f32.mrf.mxu0
    %v1022 = vadd.f32 0.0, %v1021
    %1023 = vmatprep.mubr.bf16.mxu0 0
    %1024 = vmatmul.mubr.bf16.gmra.mxu0 %v937
    %v1025 = vpop.f32.mrf.mxu0
    %v1026 = vadd.f32 0.0, %v1025
    %v1027 = vpop.f32.mrf.mxu0
    %v1028 = vadd.f32 0.0, %v1027
    %v1029 = vpop.f32.mrf.mxu0
    %v1030 = vadd.f32 0.0, %v1029
    %v1031 = vpop.f32.mrf.mxu0
    %v1032 = vadd.f32 0.0, %v1031
    %1033 = vmatprep.mubr.bf16.mxu0 0
    %1034 = vmatmul.mubr.bf16.gmra.mxu0 %v940
    %v1035 = vpop.f32.mrf.mxu0
    %v1036 = vadd.f32 0.0, %v1035
    %v1037 = vpop.f32.mrf.mxu0
    %v1038 = vadd.f32 0.0, %v1037
    %v1039 = vpop.f32.mrf.mxu0
    %v1040 = vadd.f32 0.0, %v1039
    %v1041 = vpop.f32.mrf.mxu0
    %v1042 = vadd.f32 0.0, %v1041
    %1043 = vmatprep.mubr.bf16.mxu0 0
    %1044 = vmatmul.mubr.bf16.gmra.mxu0 %v943
    %v1045 = vpop.f32.mrf.mxu0
    %v1046 = vadd.f32 0.0, %v1045
    %v1047 = vpop.f32.mrf.mxu0
    %v1048 = vadd.f32 0.0, %v1047
    %v1049 = vpop.f32.mrf.mxu0
    %v1050 = vadd.f32 0.0, %v1049
    %v1051 = vpop.f32.mrf.mxu0
    %v1052 = vadd.f32 0.0, %v1051
    %1053 = vmatprep.mubr.bf16.mxu0 0
    %1054 = vmatmul.mubr.bf16.gmra.mxu0 %v946
    %v1055 = vpop.f32.mrf.mxu0
    %v1056 = vadd.f32 0.0, %v1055
    %v1057 = vpop.f32.mrf.mxu0
    %v1058 = vadd.f32 0.0, %v1057
    %v1059 = vpop.f32.mrf.mxu0
    %v1060 = vadd.f32 0.0, %v1059
    %v1061 = vpop.f32.mrf.mxu0
    %v1062 = vadd.f32 0.0, %v1061
    %1063 = vmatprep.mubr.bf16.mxu0 0
    %1064 = vmatmul.mubr.bf16.gmra.mxu0 %v949
    %v1065 = vpop.f32.mrf.mxu0
    %v1066 = vadd.f32 0.0, %v1065
    %v1067 = vpop.f32.mrf.mxu0
    %v1068 = vadd.f32 0.0, %v1067
    %v1069 = vpop.f32.mrf.mxu0
    %v1070 = vadd.f32 0.0, %v1069
    %v1071 = vpop.f32.mrf.mxu0
    %v1072 = vadd.f32 0.0, %v1071
    %1073 = vmatprep.mubr.bf16.mxu0 0
    %1074 = vmatmul.mubr.bf16.gmra.mxu0 %v952
    %v1075 = vpop.f32.mrf.mxu0
    %v1076 = vadd.f32 0.0, %v1075
    %v1077 = vpop.f32.mrf.mxu0
    %v1078 = vadd.f32 0.0, %v1077
    %v1079 = vpop.f32.mrf.mxu0
    %v1080 = vadd.f32 0.0, %v1079
    %v1081 = vpop.f32.mrf.mxu0
    %v1082 = vadd.f32 0.0, %v1081
    %1083 = vmatprep.mubr.bf16.mxu0 0
    %1084 = vmatmul.mubr.bf16.gmra.mxu0 %v955
    %v1085 = vpop.f32.mrf.mxu0
    %v1086 = vadd.f32 0.0, %v1085
    %v1087 = vpop.f32.mrf.mxu0
    %v1088 = vadd.f32 0.0, %v1087
    %v1089 = vpop.f32.mrf.mxu0
    %v1090 = vadd.f32 0.0, %v1089
    %v1091 = vpop.f32.mrf.mxu0
    %v1092 = vadd.f32 0.0, %v1091
    %1093 = vmatprep.mubr.bf16.mxu0 0
    %1094 = vmatmul.mubr.bf16.gmra.mxu0 %v958
    %v1095 = vpop.f32.mrf.mxu0
    %v1096 = vadd.f32 0.0, %v1095
    %v1097 = vpop.f32.mrf.mxu0
    %v1098 = vadd.f32 0.0, %v1097
    %v1099 = vpop.f32.mrf.mxu0
    %v1100 = vadd.f32 0.0, %v1099
    %v1101 = vpop.f32.mrf.mxu0
    %v1102 = vadd.f32 0.0, %v1101
    %1103 = vmatprep.mubr.bf16.mxu0 0
    %1104 = vmatmul.mubr.bf16.gmra.mxu0 %v961
    %v1105 = vpop.f32.mrf.mxu0
    %v1106 = vadd.f32 0.0, %v1105
    %v1107 = vpop.f32.mrf.mxu0
    %v1108 = vadd.f32 0.0, %v1107
    %v1109 = vpop.f32.mrf.mxu0
    %v1110 = vadd.f32 0.0, %v1109
    %v1111 = vpop.f32.mrf.mxu0
    %v1112 = vadd.f32 0.0, %v1111
    %1113 = vmatprep.mubr.bf16.mxu0 0
    %1114 = vmatmul.mubr.bf16.gmra.mxu0 %v964
    %v1115 = vpop.f32.mrf.mxu0
    %v1116 = vadd.f32 0.0, %v1115
    %v1117 = vpop.f32.mrf.mxu0
    %v1118 = vadd.f32 0.0, %v1117
    %v1119 = vpop.f32.mrf.mxu0
    %v1120 = vadd.f32 0.0, %v1119
    %v1121 = vpop.f32.mrf.mxu0
    %v1122 = vadd.f32 0.0, %v1121
    %1123 = vmatprep.mubr.bf16.mxu0 0
    %1124 = vmatmul.mubr.bf16.gmra.mxu0 %v967
    %v1125 = vpop.f32.mrf.mxu0
    %v1126 = vadd.f32 0.0, %v1125
    %v1127 = vpop.f32.mrf.mxu0
    %v1128 = vadd.f32 0.0, %v1127
    %v1129 = vpop.f32.mrf.mxu0
    %v1130 = vadd.f32 0.0, %v1129
    %v1131 = vpop.f32.mrf.mxu0
    %v1132 = vadd.f32 0.0, %v1131
    %1133 = vmatprep.mubr.bf16.mxu0 0
    %1134 = vmatmul.mubr.bf16.gmra.mxu0 %v970
    %v1135 = vpop.f32.mrf.mxu0
    %v1136 = vadd.f32 0.0, %v1135
    %v1137 = vpop.f32.mrf.mxu0
    %v1138 = vadd.f32 0.0, %v1137
    %v1139 = vpop.f32.mrf.mxu0
    %v1140 = vadd.f32 0.0, %v1139
    %v1141 = vpop.f32.mrf.mxu0
    %v1142 = vadd.f32 0.0, %v1141
    %1143 = vmatprep.mubr.bf16.mxu0 0
    %1144 = vmatmul.mubr.bf16.gmra.mxu0 %v973
    %v1145 = vpop.f32.mrf.mxu0
    %v1146 = vadd.f32 0.0, %v1145
    %v1147 = vpop.f32.mrf.mxu0
    %v1148 = vadd.f32 0.0, %v1147
    %v1149 = vpop.f32.mrf.mxu0
    %v1150 = vadd.f32 0.0, %v1149
    %v1151 = vpop.f32.mrf.mxu0
    %v1152 = vadd.f32 0.0, %v1151
    %1153 = vmatprep.mubr.bf16.mxu0 0
    %1154 = vmatmul.mubr.bf16.gmra.mxu0 %v976
    %v1155 = vpop.f32.mrf.mxu0
    %v1156 = vadd.f32 0.0, %v1155
    %v1157 = vpop.f32.mrf.mxu0
    %v1158 = vadd.f32 0.0, %v1157
    %v1159 = vpop.f32.mrf.mxu0
    %v1160 = vadd.f32 0.0, %v1159
    %v1161 = vpop.f32.mrf.mxu0
    %v1162 = vadd.f32 0.0, %v1161
    %1163 = vmatprep.mubr.bf16.mxu0 0
    %1164 = vmatmul.mubr.bf16.gmra.mxu0 %v979
    %v1165 = vpop.f32.mrf.mxu0
    %v1166 = vadd.f32 0.0, %v1165
    %v1167 = vpop.f32.mrf.mxu0
    %v1168 = vadd.f32 0.0, %v1167
    %v1169 = vpop.f32.mrf.mxu0
    %v1170 = vadd.f32 0.0, %v1169
    %v1171 = vpop.f32.mrf.mxu0
    %v1172 = vadd.f32 0.0, %v1171
    %1173 = vdwg.mxu0
    %v1174 = vmax.f32 %v1016, 0.0
    %v1175 = vmax.f32 %v1018, 0.0
    %v1176 = vmax.f32 %v1020, 0.0
    %v1177 = vmax.f32 %v1022, 0.0
    %v1178 = vmax.f32 %v1026, 0.0
    %v1179 = vmax.f32 %v1028, 0.0
    %v1180 = vmax.f32 %v1030, 0.0
    %v1181 = vmax.f32 %v1032, 0.0
    %v1182 = vmax.f32 %v1036, 0.0
    %v1183 = vmax.f32 %v1038, 0.0
    %v1184 = vmax.f32 %v1040, 0.0
    %v1185 = vmax.f32 %v1042, 0.0
    %v1186 = vmax.f32 %v1046, 0.0
    %v1187 = vmax.f32 %v1048, 0.0
    %v1188 = vmax.f32 %v1050, 0.0
    %v1189 = vmax.f32 %v1052, 0.0
    %v1190 = vmax.f32 %v1056, 0.0
    %v1191 = vmax.f32 %v1058, 0.0
    %v1192 = vmax.f32 %v1060, 0.0
    %v1193 = vmax.f32 %v1062, 0.0
    %v1194 = vmax.f32 %v1066, 0.0
    %v1195 = vmax.f32 %v1068, 0.0
    %v1196 = vmax.f32 %v1070, 0.0
    %v1197 = vmax.f32 %v1072, 0.0
    %v1198 = vmax.f32 %v1076, 0.0
    %v1199 = vmax.f32 %v1078, 0.0
    %v1200 = vmax.f32 %v1080, 0.0
    %v1201 = vmax.f32 %v1082, 0.0
    %v1202 = vmax.f32 %v1086, 0.0
    %v1203 = vmax.f32 %v1088, 0.0
    %v1204 = vmax.f32 %v1090, 0.0
    %v1205 = vmax.f32 %v1092, 0.0
    %v1206 = vmax.f32 %v1096, 0.0
    %v1207 = vmax.f32 %v1098, 0.0
    %v1208 = vmax.f32 %v1100, 0.0
    %v1209 = vmax.f32 %v1102, 0.0
    %v1210 = vmax.f32 %v1106, 0.0
    %v1211 = vmax.f32 %v1108, 0.0
    %v1212 = vmax.f32 %v1110, 0.0
    %v1213 = vmax.f32 %v1112, 0.0
    %v1214 = vmax.f32 %v1116, 0.0
    %v1215 = vmax.f32 %v1118, 0.0
    %v1216 = vmax.f32 %v1120, 0.0
    %v1217 = vmax.f32 %v1122, 0.0
    %v1218 = vmax.f32 %v1126, 0.0
    %v1219 = vmax.f32 %v1128, 0.0
    %v1220 = vmax.f32 %v1130, 0.0
    %v1221 = vmax.f32 %v1132, 0.0
    %v1222 = vmax.f32 %v1136, 0.0
    %v1223 = vmax.f32 %v1138, 0.0
    %v1224 = vmax.f32 %v1140, 0.0
    %v1225 = vmax.f32 %v1142, 0.0
    %v1226 = vmax.f32 %v1146, 0.0
    %v1227 = vmax.f32 %v1148, 0.0
    %v1228 = vmax.f32 %v1150, 0.0
    %v1229 = vmax.f32 %v1152, 0.0
    %v1230 = vmax.f32 %v1156, 0.0
    %v1231 = vmax.f32 %v1158, 0.0
    %v1232 = vmax.f32 %v1160, 0.0
    %v1233 = vmax.f32 %v1162, 0.0
    %v1234 = vmax.f32 %v1166, 0.0
    %v1235 = vmax.f32 %v1168, 0.0
    %v1236 = vmax.f32 %v1170, 0.0
    %v1237 = vmax.f32 %v1172, 0.0
    %v1238 = vmul.f32 %v1174, %v1174
    %v1239 = vmul.f32 %v1175, %v1175
    %v1240 = vmul.f32 %v1176, %v1176
    %v1241 = vmul.f32 %v1177, %v1177
    %v1242 = vmul.f32 %v1178, %v1178
    %v1243 = vmul.f32 %v1179, %v1179
    %v1244 = vmul.f32 %v1180, %v1180
    %v1245 = vmul.f32 %v1181, %v1181
    %v1246 = vmul.f32 %v1182, %v1182
    %v1247 = vmul.f32 %v1183, %v1183
    %v1248 = vmul.f32 %v1184, %v1184
    %v1249 = vmul.f32 %v1185, %v1185
    %v1250 = vmul.f32 %v1186, %v1186
    %v1251 = vmul.f32 %v1187, %v1187
    %v1252 = vmul.f32 %v1188, %v1188
    %v1253 = vmul.f32 %v1189, %v1189
    %v1254 = vmul.f32 %v1190, %v1190
    %v1255 = vmul.f32 %v1191, %v1191
    %v1256 = vmul.f32 %v1192, %v1192
    %v1257 = vmul.f32 %v1193, %v1193
    %v1258 = vmul.f32 %v1194, %v1194
    %v1259 = vmul.f32 %v1195, %v1195
    %v1260 = vmul.f32 %v1196, %v1196
    %v1261 = vmul.f32 %v1197, %v1197
    %v1262 = vmul.f32 %v1198, %v1198
    %v1263 = vmul.f32 %v1199, %v1199
    %v1264 = vmul.f32 %v1200, %v1200
    %v1265 = vmul.f32 %v1201, %v1201
    %v1266 = vmul.f32 %v1202, %v1202
    %v1267 = vmul.f32 %v1203, %v1203
    %v1268 = vmul.f32 %v1204, %v1204
    %v1269 = vmul.f32 %v1205, %v1205
    %v1270 = vmul.f32 %v1206, %v1206
    %v1271 = vmul.f32 %v1207, %v1207
    %v1272 = vmul.f32 %v1208, %v1208
    %v1273 = vmul.f32 %v1209, %v1209
    %v1274 = vmul.f32 %v1210, %v1210
    %v1275 = vmul.f32 %v1211, %v1211
    %v1276 = vmul.f32 %v1212, %v1212
    %v1277 = vmul.f32 %v1213, %v1213
    %v1278 = vmul.f32 %v1214, %v1214
    %v1279 = vmul.f32 %v1215, %v1215
    %v1280 = vmul.f32 %v1216, %v1216
    %v1281 = vmul.f32 %v1217, %v1217
    %v1282 = vmul.f32 %v1218, %v1218
    %v1283 = vmul.f32 %v1219, %v1219
    %v1284 = vmul.f32 %v1220, %v1220
    %v1285 = vmul.f32 %v1221, %v1221
    %v1286 = vmul.f32 %v1222, %v1222
    %v1287 = vmul.f32 %v1223, %v1223
    %v1288 = vmul.f32 %v1224, %v1224
    %v1289 = vmul.f32 %v1225, %v1225
    %v1290 = vmul.f32 %v1226, %v1226
    %v1291 = vmul.f32 %v1227, %v1227
    %v1292 = vmul.f32 %v1228, %v1228
    %v1293 = vmul.f32 %v1229, %v1229
    %v1294 = vmul.f32 %v1230, %v1230
    %v1295 = vmul.f32 %v1231, %v1231
    %v1296 = vmul.f32 %v1232, %v1232
    %v1297 = vmul.f32 %v1233, %v1233
    %v1298 = vmul.f32 %v1234, %v1234
    %v1299 = vmul.f32 %v1235, %v1235
    %v1300 = vmul.f32 %v1236, %v1236
    %v1301 = vmul.f32 %v1237, %v1237
    %1302 = vmatprep.subr.mxu0 %v1269
    %1303 = vmatpush1.xpose.msra.mxu0 %v1268
    %1304 = vmatprep.subr.mxu0 %v1267
    %1305 = vmatpush1.xpose.msra.mxu0 %v1266
    %1306 = vmatprep.subr.mxu0 %v1265
    %1307 = vmatpush1.xpose.msra.mxu0 %v1264
    %1308 = vmatprep.subr.mxu0 %v1263
    %1309 = vmatpush1.xpose.msra.mxu0 %v1262
    %1310 = vmatprep.subr.mxu0 %v1261
    %1311 = vmatpush1.xpose.msra.mxu0 %v1260
    %1312 = vmatprep.subr.mxu0 %v1259
    %1313 = vmatpush1.xpose.msra.mxu0 %v1258
    %1314 = vmatprep.subr.mxu0 %v1257
    %1315 = vmatpush1.xpose.msra.mxu0 %v1256
    %1316 = vmatprep.subr.mxu0 %v1255
    %1317 = vmatpush1.xpose.msra.mxu0 %v1254
    %1318 = vmatprep.subr.mxu0 %v1253
    %1319 = vmatpush1.xpose.msra.mxu0 %v1252
    %1320 = vmatprep.subr.mxu0 %v1251
    %1321 = vmatpush1.xpose.msra.mxu0 %v1250
    %1322 = vmatprep.subr.mxu0 %v1249
    %1323 = vmatpush1.xpose.msra.mxu0 %v1248
    %1324 = vmatprep.subr.mxu0 %v1247
    %1325 = vmatpush1.xpose.msra.mxu0 %v1246
    %1326 = vmatprep.subr.mxu0 %v1245
    %1327 = vmatpush1.xpose.msra.mxu0 %v1244
    %1328 = vmatprep.subr.mxu0 %v1243
    %1329 = vmatpush1.xpose.msra.mxu0 %v1242
    %1330 = vmatprep.subr.mxu0 %v1241
    %1331 = vmatpush1.xpose.msra.mxu0 %v1240
    %1332 = vmatprep.subr.mxu0 %v1239
    %1333 = vmatpush1.xpose.msra.mxu0 %v1238
    %1334 = vmatprep.subr.mxu0 %v1301
    %1335 = vmatpush2.xpose.msra.mxu0 %v1300
    %1336 = vmatprep.subr.mxu0 %v1299
    %1337 = vmatpush2.xpose.msra.mxu0 %v1298
    %1338 = vmatprep.subr.mxu0 %v1297
    %1339 = vmatpush2.xpose.msra.mxu0 %v1296
    %1340 = vmatprep.subr.mxu0 %v1295
    %1341 = vmatpush2.xpose.msra.mxu0 %v1294
    %1342 = vmatprep.subr.mxu0 %v1293
    %1343 = vmatpush2.xpose.msra.mxu0 %v1292
    %1344 = vmatprep.subr.mxu0 %v1291
    %1345 = vmatpush2.xpose.msra.mxu0 %v1290
    %1346 = vmatprep.subr.mxu0 %v1289
    %1347 = vmatpush2.xpose.msra.mxu0 %v1288
    %1348 = vmatprep.subr.mxu0 %v1287
    %1349 = vmatpush2.xpose.msra.mxu0 %v1286
    %1350 = vmatprep.subr.mxu0 %v1285
    %1351 = vmatpush2.xpose.msra.mxu0 %v1284
    %1352 = vmatprep.subr.mxu0 %v1283
    %1353 = vmatpush2.xpose.msra.mxu0 %v1282
    %1354 = vmatprep.subr.mxu0 %v1281
    %1355 = vmatpush2.xpose.msra.mxu0 %v1280
    %1356 = vmatprep.subr.mxu0 %v1279
    %1357 = vmatpush2.xpose.msra.mxu0 %v1278
    %1358 = vmatprep.subr.mxu0 %v1277
    %1359 = vmatpush2.xpose.msra.mxu0 %v1276
    %1360 = vmatprep.subr.mxu0 %v1275
    %1361 = vmatpush2.xpose.msra.mxu0 %v1274
    %1362 = vmatprep.subr.mxu0 %v1273
    %1363 = vmatpush2.xpose.msra.mxu0 %v1272
    %1364 = vmatprep.subr.mxu0 %v1271
    %1365 = vmatpush2.xpose.msra.mxu0 %v1270
    %1366 = vmatprep.mubr.f32.mxu0 1.0
    %1367 = vmatmul.mubr.f32.gmra.mxu0 1.0
    %v1368 = vpop.f32.mrf.mxu0
    %v1369 = vadd.f32 0.0, %v1368
    %v1370 = vpop.f32.mrf.mxu0
    %v1371 = vadd.f32 0.0, %v1370
    %1372 = vdwg.mxu0
    %v1374 = vlaneseq
    %v1375 = vshrl.u32 %v1374, 7
    %v1376 = vsub.s32 0, %v1375
    %v1377 = vrot.slane %v860, %v1376
    %v1378 = vlaneseq
    %v1379 = vshrl.u32 %v1378, 7
    %v1380 = vsub.s32 1, %v1379
    %v1381 = vrot.slane %v860, %v1380
    %v1384 = vmul.f32 %v1238, %v1377
    %v1385 = vmul.f32 %v1239, %v1381
    %v1386 = vmul.f32 %v1240, %v1377
    %v1387 = vmul.f32 %v1241, %v1381
    %v1388 = vmul.f32 %v1242, %v1377
    %v1389 = vmul.f32 %v1243, %v1381
    %v1390 = vmul.f32 %v1244, %v1377
    %v1391 = vmul.f32 %v1245, %v1381
    %v1392 = vmul.f32 %v1246, %v1377
    %v1393 = vmul.f32 %v1247, %v1381
    %v1394 = vmul.f32 %v1248, %v1377
    %v1395 = vmul.f32 %v1249, %v1381
    %v1396 = vmul.f32 %v1250, %v1377
    %v1397 = vmul.f32 %v1251, %v1381
    %v1398 = vmul.f32 %v1252, %v1377
    %v1399 = vmul.f32 %v1253, %v1381
    %v1400 = vmul.f32 %v1254, %v1377
    %v1401 = vmul.f32 %v1255, %v1381
    %v1402 = vmul.f32 %v1256, %v1377
    %v1403 = vmul.f32 %v1257, %v1381
    %v1404 = vmul.f32 %v1258, %v1377
    %v1405 = vmul.f32 %v1259, %v1381
    %v1406 = vmul.f32 %v1260, %v1377
    %v1407 = vmul.f32 %v1261, %v1381
    %v1408 = vmul.f32 %v1262, %v1377
    %v1409 = vmul.f32 %v1263, %v1381
    %v1410 = vmul.f32 %v1264, %v1377
    %v1411 = vmul.f32 %v1265, %v1381
    %v1412 = vmul.f32 %v1266, %v1377
    %v1413 = vmul.f32 %v1267, %v1381
    %v1414 = vmul.f32 %v1268, %v1377
    %v1415 = vmul.f32 %v1269, %v1381
    %v1416 = vmul.f32 %v1270, %v1377
    %v1417 = vmul.f32 %v1271, %v1381
    %v1418 = vmul.f32 %v1272, %v1377
    %v1419 = vmul.f32 %v1273, %v1381
    %v1420 = vmul.f32 %v1274, %v1377
    %v1421 = vmul.f32 %v1275, %v1381
    %v1422 = vmul.f32 %v1276, %v1377
    %v1423 = vmul.f32 %v1277, %v1381
    %v1424 = vmul.f32 %v1278, %v1377
    %v1425 = vmul.f32 %v1279, %v1381
    %v1426 = vmul.f32 %v1280, %v1377
    %v1427 = vmul.f32 %v1281, %v1381
    %v1428 = vmul.f32 %v1282, %v1377
    %v1429 = vmul.f32 %v1283, %v1381
    %v1430 = vmul.f32 %v1284, %v1377
    %v1431 = vmul.f32 %v1285, %v1381
    %v1432 = vmul.f32 %v1286, %v1377
    %v1433 = vmul.f32 %v1287, %v1381
    %v1434 = vmul.f32 %v1288, %v1377
    %v1435 = vmul.f32 %v1289, %v1381
    %v1436 = vmul.f32 %v1290, %v1377
    %v1437 = vmul.f32 %v1291, %v1381
    %v1438 = vmul.f32 %v1292, %v1377
    %v1439 = vmul.f32 %v1293, %v1381
    %v1440 = vmul.f32 %v1294, %v1377
    %v1441 = vmul.f32 %v1295, %v1381
    %v1442 = vmul.f32 %v1296, %v1377
    %v1443 = vmul.f32 %v1297, %v1381
    %v1444 = vmul.f32 %v1298, %v1377
    %v1445 = vmul.f32 %v1299, %v1381
    %v1446 = vmul.f32 %v1300, %v1377
    %v1447 = vmul.f32 %v1301, %v1381
    %v1448 = vpack.c.bf16 %v1386, %v1384
    %v1449 = vpack.c.bf16 %v1387, %v1385
    %v1450 = vpack.c.bf16 %v1390, %v1388
    %v1451 = vpack.c.bf16 %v1391, %v1389
    %v1452 = vpack.c.bf16 %v1394, %v1392
    %v1453 = vpack.c.bf16 %v1395, %v1393
    %v1454 = vpack.c.bf16 %v1398, %v1396
    %v1455 = vpack.c.bf16 %v1399, %v1397
    %v1456 = vpack.c.bf16 %v1402, %v1400
    %v1457 = vpack.c.bf16 %v1403, %v1401
    %v1458 = vpack.c.bf16 %v1406, %v1404
    %v1459 = vpack.c.bf16 %v1407, %v1405
    %v1460 = vpack.c.bf16 %v1410, %v1408
    %v1461 = vpack.c.bf16 %v1411, %v1409
    %v1462 = vpack.c.bf16 %v1414, %v1412
    %v1463 = vpack.c.bf16 %v1415, %v1413
    %v1464 = vpack.c.bf16 %v1418, %v1416
    %v1465 = vpack.c.bf16 %v1419, %v1417
    %v1466 = vpack.c.bf16 %v1422, %v1420
    %v1467 = vpack.c.bf16 %v1423, %v1421
    %v1468 = vpack.c.bf16 %v1426, %v1424
    %v1469 = vpack.c.bf16 %v1427, %v1425
    %v1470 = vpack.c.bf16 %v1430, %v1428
    %v1471 = vpack.c.bf16 %v1431, %v1429
    %v1472 = vpack.c.bf16 %v1434, %v1432
    %v1473 = vpack.c.bf16 %v1435, %v1433
    %v1474 = vpack.c.bf16 %v1438, %v1436
    %v1475 = vpack.c.bf16 %v1439, %v1437
    %v1476 = vpack.c.bf16 %v1442, %v1440
    %v1477 = vpack.c.bf16 %v1443, %v1441
    %v1478 = vpack.c.bf16 %v1446, %v1444
    %v1479 = vpack.c.bf16 %v1447, %v1445
    %1480 = vmatprep.subr.bf16.mxu0 %v1463
    %1481 = vmatpush1.bf16.xpose.msra.mxu0 %v1462
    %1482 = vmatprep.subr.bf16.mxu0 %v1461
    %1483 = vmatpush1.bf16.xpose.msra.mxu0 %v1460
    %1484 = vmatprep.subr.bf16.mxu0 %v1459
    %1485 = vmatpush1.bf16.xpose.msra.mxu0 %v1458
    %1486 = vmatprep.subr.bf16.mxu0 %v1457
    %1487 = vmatpush1.bf16.xpose.msra.mxu0 %v1456
    %1488 = vmatprep.subr.bf16.mxu0 %v1455
    %1489 = vmatpush1.bf16.xpose.msra.mxu0 %v1454
    %1490 = vmatprep.subr.bf16.mxu0 %v1453
    %1491 = vmatpush1.bf16.xpose.msra.mxu0 %v1452
    %1492 = vmatprep.subr.bf16.mxu0 %v1451
    %1493 = vmatpush1.bf16.xpose.msra.mxu0 %v1450
    %1494 = vmatprep.subr.bf16.mxu0 %v1449
    %1495 = vmatpush1.bf16.xpose.msra.mxu0 %v1448
    %1496 = vmatprep.subr.bf16.mxu0 %v1479
    %1497 = vmatpush2.bf16.xpose.msra.mxu0 %v1478
    %1498 = vmatprep.subr.bf16.mxu0 %v1477
    %1499 = vmatpush2.bf16.xpose.msra.mxu0 %v1476
    %1500 = vmatprep.subr.bf16.mxu0 %v1475
    %1501 = vmatpush2.bf16.xpose.msra.mxu0 %v1474
    %1502 = vmatprep.subr.bf16.mxu0 %v1473
    %1503 = vmatpush2.bf16.xpose.msra.mxu0 %v1472
    %1504 = vmatprep.subr.bf16.mxu0 %v1471
    %1505 = vmatpush2.bf16.xpose.msra.mxu0 %v1470
    %1506 = vmatprep.subr.bf16.mxu0 %v1469
    %1507 = vmatpush2.bf16.xpose.msra.mxu0 %v1468
    %1508 = vmatprep.subr.bf16.mxu0 %v1467
    %1509 = vmatpush2.bf16.xpose.msra.mxu0 %v1466
    %1510 = vmatprep.subr.bf16.mxu0 %v1465
    %1511 = vmatpush2.bf16.xpose.msra.mxu0 %v1464
    %1512 = vmatprep.mubr.bf16.mxu0 %v926
    %1513 = vmatmul.mubr.bf16.gmra.mxu0 %v925
    %v1514 = vpop.f32.mrf.mxu0
    %v1515 = vadd.f32 0.0, %v1514
    %v1516 = vpop.f32.mrf.mxu0
    %v1517 = vadd.f32 0.0, %v1516
    %v1518 = vpop.f32.mrf.mxu0
    %v1519 = vadd.f32 0.0, %v1518
    %v1520 = vpop.f32.mrf.mxu0
    %v1521 = vadd.f32 0.0, %v1520
    %1522 = vmatprep.mubr.bf16.mxu0 %v928
    %1523 = vmatmul.mubr.bf16.gmra.mxu0 %v927
    %v1524 = vpop.f32.mrf.mxu0
    %v1525 = vadd.f32 0.0, %v1524
    %v1526 = vpop.f32.mrf.mxu0
    %v1527 = vadd.f32 0.0, %v1526
    %v1528 = vpop.f32.mrf.mxu0
    %v1529 = vadd.f32 0.0, %v1528
    %v1530 = vpop.f32.mrf.mxu0
    %v1531 = vadd.f32 0.0, %v1530
    %1532 = vdwg.mxu0
    %v1533 = vpack.c.bf16 %v1519, %v1515
    %v1534 = vpack.c.bf16 %v1521, %v1517
    %v1535 = vpack.c.bf16 %v1529, %v1525
    %v1536 = vpack.c.bf16 %v1531, %v1527
    %v1537 = vlaneseq
    %v1538 = vshrl.u32 %v1537, 7
    %v1539 = vsub.s32 0, %v1538
    %v1540 = vrot.slane %v1369, %v1539
    %v1541 = vlaneseq
    %v1542 = vshrl.u32 %v1541, 7
    %v1543 = vsub.s32 0, %v1542
    %v1544 = vrot.slane %v1371, %v1543
    %v1545 = vmul.f32 %v749, %v1540
    %v1546 = vmul.f32 %v749, %v1544
    %v1547 = vmul.f32 %v754, %v1540
    %v1548 = vmul.f32 %v754, %v1544
    %v1549 = vmul.f32 %v759, %v1540
    %v1550 = vmul.f32 %v759, %v1544
    %v1551 = vmul.f32 %v764, %v1540
    %v1552 = vmul.f32 %v764, %v1544
    %1553 = vmatprep.subr.bf16.mxu0 0
    %1554 = vmatpush1.bf16.msra.mxu0 0
    %1555 = vmatprep.subr.bf16.mxu0 0
    %1556 = vmatpush1.bf16.msra.mxu0 0
    %1557 = vmatprep.subr.bf16.mxu0 0
    %1558 = vmatpush1.bf16.msra.mxu0 0
    %1559 = vmatprep.subr.bf16.mxu0 0
    %1560 = vmatpush1.bf16.msra.mxu0 0
    %1561 = vmatprep.subr.bf16.mxu0 0
    %1562 = vmatpush1.bf16.msra.mxu0 0
    %1563 = vmatprep.subr.bf16.mxu0 0
    %1564 = vmatpush1.bf16.msra.mxu0 0
    %1565 = vmatprep.subr.bf16.mxu0 %v1536
    %1566 = vmatpush1.bf16.msra.mxu0 %v1535
    %1567 = vmatprep.subr.bf16.mxu0 %v1534
    %1568 = vmatpush1.bf16.msra.mxu0 %v1533
    %1569 = vmatprep.subr.bf16.mxu0 0
    %1570 = vmatpush2.bf16.msra.mxu0 0
    %1571 = vmatprep.subr.bf16.mxu0 0
    %1572 = vmatpush2.bf16.msra.mxu0 0
    %1573 = vmatprep.subr.bf16.mxu0 0
    %1574 = vmatpush2.bf16.msra.mxu0 0
    %1575 = vmatprep.subr.bf16.mxu0 0
    %1576 = vmatpush2.bf16.msra.mxu0 0
    %1577 = vmatprep.subr.bf16.mxu0 0
    %1578 = vmatpush2.bf16.msra.mxu0 0
    %1579 = vmatprep.subr.bf16.mxu0 0
    %1580 = vmatpush2.bf16.msra.mxu0 0
    %1581 = vmatprep.subr.bf16.mxu0 0
    %1582 = vmatpush2.bf16.msra.mxu0 0
    %1583 = vmatprep.subr.bf16.mxu0 0
    %1584 = vmatpush2.bf16.msra.mxu0 0
    %1585 = vmatprep.mubr.bf16.mxu0 0
    %1586 = vmatmul.mubr.bf16.gmra.mxu0 %v783
    %v1587 = vpop.f32.mrf.mxu0
    %v1588 = vadd.f32 %v1545, %v1587
    %v1589 = vpop.f32.mrf.mxu0
    %v1590 = vadd.f32 %v1546, %v1589
    %v1591 = vpop.f32.mrf.mxu0
    %v1592 = vadd.f32 %v1547, %v1591
    %v1593 = vpop.f32.mrf.mxu0
    %v1594 = vadd.f32 %v1548, %v1593
    %1595 = vmatprep.mubr.bf16.mxu0 0
    %1596 = vmatmul.mubr.bf16.gmra.mxu0 %v786
    %v1597 = vpop.f32.mrf.mxu0
    %v1598 = vadd.f32 %v1549, %v1597
    %v1599 = vpop.f32.mrf.mxu0
    %v1600 = vadd.f32 %v1550, %v1599
    %v1601 = vpop.f32.mrf.mxu0
    %v1602 = vadd.f32 %v1551, %v1601
    %v1603 = vpop.f32.mrf.mxu0
    %v1604 = vadd.f32 %v1552, %v1603
    %1605 = vdwg.mxu0
    %s1606 = scalar_lea.vmem [#allocation7], 64
    %1607 = vst [vmem:[%s1606] sm:$0xff] %v1588
    %1608 = vst [vmem:[%s1606 + $0x8] sm:$0xff] %v1590
    %1609 = vst [vmem:[%s1606 + $0x10] sm:$0xff] %v1592
    %1610 = vst [vmem:[%s1606 + $0x18] sm:$0xff] %v1594
    %1611 = vst [vmem:[%s1606 + $0x20] sm:$0xff] %v1598
    %1612 = vst [vmem:[%s1606 + $0x28] sm:$0xff] %v1600
    %1613 = vst [vmem:[%s1606 + $0x30] sm:$0xff] %v1602
    %1614 = vst [vmem:[%s1606 + $0x38] sm:$0xff] %v1604
    // Predicated region
    $region30: #{tpu_custom_call.1} parent=1 // pred_check
      _
    $region31: #{tpu_custom_call.1} parent=1 // pred_check_branch
      %1616 = sbr.rel (0) target = $region33
    $region32: #{tpu_custom_call.1} parent=1 // pred_region
      %s1618 = ssub.s32 2048, 2048
      %1619 = vsyncadd [#allocation4], %s1618
      %s1620 = sshll.u32 [#allocation7], 4
      %s1621 = int_to_ptr.vmem [resolvable:$true] %s1620
      %1626 = dma.vmem_to_hbm [thread:$0]  %s1621, 2048, %s5, [#allocation4], 256, 256, 16
    $region33: #{tpu_custom_call.1} parent=1 // pred_fallthru
      _
    // Predicated region
    $region34: #{tpu_custom_call.1} parent=1 // pred_check
      _
    $region35: #{tpu_custom_call.1} parent=1 // pred_check_branch
      %1628 = sbr.rel (0) target = $region37
    $region36: #{tpu_custom_call.1} parent=1 // pred_region
      %1629 = dma.done [#allocation4], 2048
    $region37: #{tpu_custom_call.1} parent=1 // pred_fallthru
      _
    %1630 = vsyncpa [#allocation3], 1
    %1631 = vsyncpa [#allocation6], 1
    %1632 = vsyncpa [#allocation4], 1

</llo_original>
